<compile_context>
chip_gen: v5e
topology: v5e:2x2
jax: 0.10.0
libtpu: 0.0.40
codegen_flags: <defaults>
</compile_context>

<pallas_src>
import math
import jax
import jax.numpy as jnp
from jax.experimental import pallas as pl
from jax.experimental.pallas import tpu as pltpu


# ----------------------------------------------------------------------------- config
WIN, HOP, NFFT = 64, 32, 64
NFREQ = NFFT // 2 + 1          # 33 rfft bins
NMELS = 32
CH = 32                        # encoder channels
KSIZE = 3
SE_H = 8
ATT_H = 16
EMB = 32
NCLASS = 2

DFT_PAD = 128                  # cos||sin columns zero-padded to one full lane width
OUT_PAD = 128                  # packed [emb | logits | 0...] output slab width

MXU_DTYPE = jnp.bfloat16       # matmul weight dtype (f32 accumulation)

assert NMELS == CH             # preprocessor output feeds the first encoder block
assert EMB + NCLASS <= OUT_PAD


def _mm(a, w):
    """MXU matmul: weight already bf16 (host pre-cast), activation cast, f32 acc."""
    return jnp.dot(a.astype(w.dtype), w, preferred_element_type=jnp.float32)


# ----------------------------------------------------------------------------- kernel
def fused_kernel(*refs):
    """melspec -> 2 TitaNet conv blocks -> attentive-stats decoder, B_BLK utterances."""
    flen_ref = refs[0]                                   # SMEM (B,) int32 frame counts
    frames_ref, window_ref, dft_ref, melfb_ref = refs[1:5]
    blk_refs = (refs[5:14], refs[14:23])
    (wa1_ref, ba1_ref, wa2_ref, ba2_ref, wmu_ref, wsg_ref,
     bemb_ref, whead_ref, bhead_ref) = refs[23:32]
    out_ref = refs[32]

    BB, T, _ = frames_ref.shape
    BT = BB * T
    base = pl.program_id(0) * BB

    # ---- per-utterance valid-frame masks (lengths come from SMEM scalar prefetch)
    t_iota = jax.lax.broadcasted_iota(jnp.int32, (1, T, 1), 1)
    m3 = jnp.concatenate(
        [(t_iota < flen_ref[base + b]).astype(jnp.float32) for b in range(BB)],
        axis=0)                                                      # (BB, T, 1)
    cnt = jnp.sum(m3, axis=1)                                        # (BB, 1)
    inv_cnt = pl.reciprocal(cnt, approx=True)                        # (BB, 1)
    inv_cnt1 = pl.reciprocal(jnp.maximum(cnt - 1.0, 1.0), approx=True)

    # depthwise-conv boundary masks (zero the wrapped row from pltpu.roll)
    loc = jax.lax.broadcasted_iota(jnp.int32, (T, 1), 0)
    nf_t = (loc > 0).astype(jnp.float32)
    nl_t = (loc < T - 1).astype(jnp.float32)
    not_first = jnp.concatenate([nf_t] * BB, axis=0)                 # (BT, 1)
    not_last = jnp.concatenate([nl_t] * BB, axis=0)                  # (BT, 1)

    # ---- preprocessor: window -> |DFT|^2 -> mel -> log -> masked per-feature norm
    fw = frames_ref[...].reshape(BT, WIN) * window_ref[...]          # (BT, WIN)
    spec = jnp.dot(fw, dft_ref[...], preferred_element_type=jnp.float32)       # f32
    mel_e = jnp.dot(spec * spec, melfb_ref[...], preferred_element_type=jnp.float32)
    lm3 = jnp.log(mel_e + 2.0 ** -24).reshape(BB, T, NMELS)
    mean3 = jnp.sum(lm3 * m3, axis=1, keepdims=True) * inv_cnt[:, None, :]
    var3 = jnp.sum(((lm3 - mean3) * m3) ** 2, axis=1, keepdims=True) * inv_cnt1[:, None, :]
    x3 = (lm3 - mean3) * jax.lax.rsqrt(var3 + 1e-10) * m3
    x = x3.reshape(BT, CH)

    # ---- encoder block: depthwise(k=3) -> pointwise(+folded BN) -> SE -> +res -> ReLU
    def enc_block(xin, blk):
        (wdw_ref, wpw_ref, bpw_ref, sw1_ref, sb1_ref,
         sw2_ref, sb2_ref, wres_ref, bres_ref) = blk
        wdw = wdw_ref[...]                                           # (K, Cin) f32
        # register-level time shifts on the XLU; boundary rows (incl. cross-utterance
        # wrap) zeroed by the static masks
        xl = pltpu.roll(xin, 1, axis=0) * not_first                  # x[t-1]
        xr = pltpu.roll(xin, BT - 1, axis=0) * not_last              # x[t+1]
        y = xin * wdw[1:2, :] + xl * wdw[0:1, :] + xr * wdw[2:3, :]  # depthwise conv
        y2 = _mm(y, wpw_ref[...]) + bpw_ref[...]                     # pointwise + BN
        y23 = y2.reshape(BB, T, CH)
        s = jnp.sum(y23 * m3, axis=1) * inv_cnt                      # SE pool (BB, C)
        z = jnp.maximum(_mm(s, sw1_ref[...]) + sb1_ref[...], 0.0)
        z = jax.nn.sigmoid(_mm(z, sw2_ref[...]) + sb2_ref[...])      # (BB, C)
        r3 = (_mm(xin, wres_ref[...]) + bres_ref[...]).reshape(BB, T, CH)
        out3 = jnp.maximum(y23 * z[:, None, :] + r3, 0.0) * m3
        return out3.reshape(BT, CH)

    for blk in blk_refs:
        x = enc_block(x, blk)

    # ---- decoder: attentive statistics pooling -> embedding -> packed [emb|logits]
    h = jnp.tanh(_mm(x, wa1_ref[...]) + ba1_ref[...])                # (BT, ATT_H)
    sc3 = (_mm(h, wa2_ref[...]) + ba2_ref[...]).reshape(BB, T, CH)
    sc3 = jnp.where(m3 > 0.0, sc3, -1e30)
    sc3 = sc3 - jnp.max(sc3, axis=1, keepdims=True)
    e3 = jnp.exp(sc3) * m3
    a3 = e3 / jnp.sum(e3, axis=1, keepdims=True)                     # exact softmax
    x3 = x.reshape(BB, T, CH)
    mu = jnp.sum(a3 * x3, axis=1)                                    # (BB, C)
    var_t = jnp.sum(a3 * (x3 - mu[:, None, :]) ** 2, axis=1)         # stable form
    sg = jnp.sqrt(jnp.maximum(var_t, 1e-8))
    emb = _mm(mu, wmu_ref[...]) + _mm(sg, wsg_ref[...]) + bemb_ref[...]       # (BB, EMB)
    slab = jnp.dot(emb, whead_ref[...],
                   preferred_element_type=jnp.float32) + bhead_ref[...]       # (BB, 128)
    out_ref[...] = slab


# ----------------------------------------------------------------------------- params
def make_mel_fb(n_freq, n_mels, sr=16000.0, n_fft=NFFT):
    def hz_to_mel(f):
        return 2595.0 * jnp.log10(1.0 + f / 700.0)

    def mel_to_hz(mm):
        return 700.0 * (10.0 ** (mm / 2595.0) - 1.0)

    mels = jnp.linspace(hz_to_mel(0.0), hz_to_mel(sr / 2.0), n_mels + 2)
    bins = mel_to_hz(mels) * n_fft / sr
    freqs = jnp.arange(n_freq, dtype=jnp.float32)
    lower = (freqs[None, :] - bins[:-2, None]) / (bins[1:-1, None] - bins[:-2, None] + 1e-8)
    upper = (bins[2:, None] - freqs[None, :]) / (bins[2:, None] - bins[1:-1, None] + 1e-8)
    fb = jnp.maximum(0.0, jnp.minimum(lower, upper))             # (n_mels, n_freq)
    return fb.T.astype(jnp.float32)                              # (n_freq, n_mels)


def init_params(key):
    ks = jax.random.split(key, 32)

    def nrm(k, shape, s=0.1):
        return (s * jax.random.normal(k, shape)).astype(jnp.float32)

    n = jnp.arange(WIN, dtype=jnp.float32)
    kf = jnp.arange(NFREQ, dtype=jnp.float32)
    params = {
        "window": (0.5 - 0.5 * jnp.cos(2.0 * math.pi * n / WIN)).reshape(1, WIN),
        "dft_cos": jnp.cos(2.0 * math.pi * n[:, None] * kf[None, :] / NFFT),
        "dft_sin": -jnp.sin(2.0 * math.pi * n[:, None] * kf[None, :] / NFFT),
        "mel_fb": make_mel_fb(NFREQ, NMELS),
        "blocks": [],
    }
    ki = 0
    for cin in (NMELS, CH):                                       # 2 encoder blocks
        blk = {
            "wdw": nrm(ks[ki + 0], (KSIZE, cin)),
            "wpw": nrm(ks[ki + 1], (cin, CH)),
            "bpw": nrm(ks[ki + 2], (1, CH)),
            "gamma": jnp.ones((1, CH), jnp.float32),
            "beta": jnp.zeros((1, CH), jnp.float32),
            "se_w1": nrm(ks[ki + 3], (CH, SE_H)),
            "se_b1": jnp.zeros((1, SE_H), jnp.float32),
            "se_w2": nrm(ks[ki + 4], (SE_H, CH)),
            "se_b2": jnp.zeros((1, CH), jnp.float32),
            "wres": nrm(ks[ki + 5], (cin, CH)),
            "bres": jnp.zeros((1, CH), jnp.float32),
        }
        params["blocks"].append(blk)
        ki += 6
    params["dec"] = {
        "wa1": nrm(ks[ki + 0], (CH, ATT_H)),
        "ba1": jnp.zeros((1, ATT_H), jnp.float32),
        "wa2": nrm(ks[ki + 1], (ATT_H, CH)),
        "ba2": jnp.zeros((1, CH), jnp.float32),
        "wemb_mu": nrm(ks[ki + 2], (CH, EMB)),
        "wemb_sg": nrm(ks[ki + 3], (CH, EMB)),
        "bemb": jnp.zeros((1, EMB), jnp.float32),
        "wcls": nrm(ks[ki + 4], (EMB, NCLASS)),
        "bcls": jnp.zeros((1, NCLASS), jnp.float32),
    }
    return params


def fuse_params(p):
    """Fold eval-mode BN into the pointwise conv, build lane-dense DFT / stacked-mel
    matrices, pre-cast all MXU weight operands to bf16 (activations cast in-kernel),
    and pack embedding + classifier heads into one (EMB, 128) f32 matrix so the
    kernel emits a single lane-dense output slab."""
    dft = jnp.concatenate([p["dft_cos"], p["dft_sin"]], axis=1)       # (WIN, 2*NFREQ)
    dft = jnp.pad(dft, ((0, 0), (0, DFT_PAD - 2 * NFREQ)))
    melfb = jnp.concatenate([p["mel_fb"], p["mel_fb"]], axis=0)       # (2*NFREQ, NMELS)
    melfb = jnp.pad(melfb, ((0, DFT_PAD - 2 * NFREQ), (0, 0)))
    blocks = []
    for blk in p["blocks"]:
        blocks.append({
            "wdw": blk["wdw"],                                        # f32 (VPU path)
            "wpw": (blk["wpw"] * blk["gamma"]).astype(MXU_DTYPE),     # BN folded
            "bpw": blk["bpw"] * blk["gamma"] + blk["beta"],
            "se_w1": blk["se_w1"].astype(MXU_DTYPE), "se_b1": blk["se_b1"],
            "se_w2": blk["se_w2"].astype(MXU_DTYPE), "se_b2": blk["se_b2"],
            "wres": blk["wres"].astype(MXU_DTYPE), "bres": blk["bres"],
        })
    d = p["dec"]
    whead = jnp.zeros((EMB, OUT_PAD), jnp.float32)
    whead = whead.at[:, :EMB].set(jnp.eye(EMB, dtype=jnp.float32))
    whead = whead.at[:, EMB:EMB + NCLASS].set(d["wcls"])
    bhead = jnp.zeros((1, OUT_PAD), jnp.float32)
    bhead = bhead.at[:, EMB:EMB + NCLASS].set(d["bcls"])
    return {
        "window": p["window"].astype(jnp.float32),
        "dft": dft.astype(jnp.float32),                # f32: log() amplifies error
        "melfb": melfb.astype(jnp.float32),
        "blocks": blocks,
        "dec": {"wa1": d["wa1"].astype(MXU_DTYPE), "ba1": d["ba1"],
                "wa2": d["wa2"].astype(MXU_DTYPE), "ba2": d["ba2"],
                "wemb_mu": d["wemb_mu"].astype(MXU_DTYPE),
                "wemb_sg": d["wemb_sg"].astype(MXU_DTYPE),
                "bemb": d["bemb"], "whead": whead, "bhead": bhead},
    }


# ----------------------------------------------------------------------------- forward
def model_forward(fp, inputs, lengths):
    """inputs: (B, L) raw audio f32; lengths: (B,) int32.  Returns (logits, emb)."""
    B, L = inputs.shape
    T = (L - WIN) // HOP + 1
    assert T % 8 == 0, "frame count must be sublane-aligned for in-kernel reshapes"
    B_BLK = B if B <= 8 else 8                  # utterances per program
    assert B % B_BLK == 0

    idx = jnp.arange(T)[:, None] * HOP + jnp.arange(WIN)[None, :]
    frames = inputs[:, idx].astype(jnp.float32)                       # (B, T, WIN)
    flen = jnp.clip((lengths - WIN) // HOP + 1, 1, T).astype(jnp.int32)   # (B,)

    weights = [fp["window"], fp["dft"], fp["melfb"]]
    for blk in fp["blocks"]:
        weights += [blk["wdw"], blk["wpw"], blk["bpw"], blk["se_w1"], blk["se_b1"],
                    blk["se_w2"], blk["se_b2"], blk["wres"], blk["bres"]]
    d = fp["dec"]
    weights += [d["wa1"], d["ba1"], d["wa2"], d["ba2"],
                d["wemb_mu"], d["wemb_sg"], d["bemb"], d["whead"], d["bhead"]]

    def _wspec(w):
        zeros = (0,) * w.ndim
        return pl.BlockSpec(w.shape, lambda g, fl: zeros)

    grid_spec = pltpu.PrefetchScalarGridSpec(
        num_scalar_prefetch=1,                       # flen -> SMEM scalars
        grid=(B // B_BLK,),
        in_specs=[pl.BlockSpec((B_BLK, T, WIN), lambda g, fl: (g, 0, 0))]
                 + [_wspec(w) for w in weights],
        out_specs=pl.BlockSpec((B_BLK, OUT_PAD), lambda g, fl: (g, 0)),
    )

    slab = pl.pallas_call(
        fused_kernel,
        out_shape=jax.ShapeDtypeStruct((B, OUT_PAD), jnp.float32),
        grid_spec=grid_spec,
        compiler_params=pltpu.CompilerParams(
            dimension_semantics=("parallel",)),      # only matters for >1 grid step
    )(flen, frames, *weights)

    logits = slab[:, EMB:EMB + NCLASS]
    emb = slab[:, :EMB]
    return logits, emb


# ----------------------------------------------------------------------------- main
if __name__ == "__main__":
    key = jax.random.PRNGKey(0)
    k_param, k_sig = jax.random.split(key)
    params = fuse_params(init_params(k_param))

    B, L = 2, 544                                # -> T = 16 frames
    inputs = jax.random.normal(k_sig, (B, L), dtype=jnp.float32)
    lengths = jnp.array([544, 400], dtype=jnp.int32)

    logits, emb = jax.jit(model_forward)(params, inputs, lengths)
    jax.block_until_ready((logits, emb))
    assert logits.shape == (B, NCLASS) and emb.shape == (B, EMB)
    print("KERNEL_OK")
</pallas_src>

<mosaic_0001>
module attributes {stable_mosaic.version = 11 : i64} {
  func.func @fused_kernel(%arg0: i32, %arg1: memref<2xi32, #tpu.memory_space<smem>>, %arg2: memref<2x16x64xf32, #tpu.memory_space<vmem>>, %arg3: memref<1x64xf32, #tpu.memory_space<vmem>>, %arg4: memref<64x128xf32, #tpu.memory_space<vmem>>, %arg5: memref<128x32xf32, #tpu.memory_space<vmem>>, %arg6: memref<3x32xf32, #tpu.memory_space<vmem>>, %arg7: memref<32x32xbf16, #tpu.memory_space<vmem>>, %arg8: memref<1x32xf32, #tpu.memory_space<vmem>>, %arg9: memref<32x8xbf16, #tpu.memory_space<vmem>>, %arg10: memref<1x8xf32, #tpu.memory_space<vmem>>, %arg11: memref<8x32xbf16, #tpu.memory_space<vmem>>, %arg12: memref<1x32xf32, #tpu.memory_space<vmem>>, %arg13: memref<32x32xbf16, #tpu.memory_space<vmem>>, %arg14: memref<1x32xf32, #tpu.memory_space<vmem>>, %arg15: memref<3x32xf32, #tpu.memory_space<vmem>>, %arg16: memref<32x32xbf16, #tpu.memory_space<vmem>>, %arg17: memref<1x32xf32, #tpu.memory_space<vmem>>, %arg18: memref<32x8xbf16, #tpu.memory_space<vmem>>, %arg19: memref<1x8xf32, #tpu.memory_space<vmem>>, %arg20: memref<8x32xbf16, #tpu.memory_space<vmem>>, %arg21: memref<1x32xf32, #tpu.memory_space<vmem>>, %arg22: memref<32x32xbf16, #tpu.memory_space<vmem>>, %arg23: memref<1x32xf32, #tpu.memory_space<vmem>>, %arg24: memref<32x16xbf16, #tpu.memory_space<vmem>>, %arg25: memref<1x16xf32, #tpu.memory_space<vmem>>, %arg26: memref<16x32xbf16, #tpu.memory_space<vmem>>, %arg27: memref<1x32xf32, #tpu.memory_space<vmem>>, %arg28: memref<32x32xbf16, #tpu.memory_space<vmem>>, %arg29: memref<32x32xbf16, #tpu.memory_space<vmem>>, %arg30: memref<1x32xf32, #tpu.memory_space<vmem>>, %arg31: memref<32x128xf32, #tpu.memory_space<vmem>>, %arg32: memref<1x128xf32, #tpu.memory_space<vmem>>, %arg33: memref<2x128xf32, #tpu.memory_space<vmem>>) attributes {dimension_semantics = [#tpu.dimension_semantics<parallel>], iteration_bounds = array<i64: 1>, scalar_prefetch = 1 : i64, scratch_operands = 0 : i64, tpu.core_type = #tpu.core_type<tc>, window_params = [{transform_indices = @transform_0, window_bounds = array<i64: 2, 16, 64>}, {pipeline_mode = #tpu.pipeline_mode<synchronous>, transform_indices = @transform_1, window_bounds = array<i64: 1, 64>}, {pipeline_mode = #tpu.pipeline_mode<synchronous>, transform_indices = @transform_2, window_bounds = array<i64: 64, 128>}, {pipeline_mode = #tpu.pipeline_mode<synchronous>, transform_indices = @transform_3, window_bounds = array<i64: 128, 32>}, {pipeline_mode = #tpu.pipeline_mode<synchronous>, transform_indices = @transform_4, window_bounds = array<i64: 3, 32>}, {pipeline_mode = #tpu.pipeline_mode<synchronous>, transform_indices = @transform_5, window_bounds = array<i64: 32, 32>}, {pipeline_mode = #tpu.pipeline_mode<synchronous>, transform_indices = @transform_6, window_bounds = array<i64: 1, 32>}, {pipeline_mode = #tpu.pipeline_mode<synchronous>, transform_indices = @transform_7, window_bounds = array<i64: 32, 8>}, {pipeline_mode = #tpu.pipeline_mode<synchronous>, transform_indices = @transform_8, window_bounds = array<i64: 1, 8>}, {pipeline_mode = #tpu.pipeline_mode<synchronous>, transform_indices = @transform_9, window_bounds = array<i64: 8, 32>}, {pipeline_mode = #tpu.pipeline_mode<synchronous>, transform_indices = @transform_10, window_bounds = array<i64: 1, 32>}, {pipeline_mode = #tpu.pipeline_mode<synchronous>, transform_indices = @transform_11, window_bounds = array<i64: 32, 32>}, {pipeline_mode = #tpu.pipeline_mode<synchronous>, transform_indices = @transform_12, window_bounds = array<i64: 1, 32>}, {pipeline_mode = #tpu.pipeline_mode<synchronous>, transform_indices = @transform_13, window_bounds = array<i64: 3, 32>}, {pipeline_mode = #tpu.pipeline_mode<synchronous>, transform_indices = @transform_14, window_bounds = array<i64: 32, 32>}, {pipeline_mode = #tpu.pipeline_mode<synchronous>, transform_indices = @transform_15, window_bounds = array<i64: 1, 32>}, {pipeline_mode = #tpu.pipeline_mode<synchronous>, transform_indices = @transform_16, window_bounds = array<i64: 32, 8>}, {pipeline_mode = #tpu.pipeline_mode<synchronous>, transform_indices = @transform_17, window_bounds = array<i64: 1, 8>}, {pipeline_mode = #tpu.pipeline_mode<synchronous>, transform_indices = @transform_18, window_bounds = array<i64: 8, 32>}, {pipeline_mode = #tpu.pipeline_mode<synchronous>, transform_indices = @transform_19, window_bounds = array<i64: 1, 32>}, {pipeline_mode = #tpu.pipeline_mode<synchronous>, transform_indices = @transform_20, window_bounds = array<i64: 32, 32>}, {pipeline_mode = #tpu.pipeline_mode<synchronous>, transform_indices = @transform_21, window_bounds = array<i64: 1, 32>}, {pipeline_mode = #tpu.pipeline_mode<synchronous>, transform_indices = @transform_22, window_bounds = array<i64: 32, 16>}, {pipeline_mode = #tpu.pipeline_mode<synchronous>, transform_indices = @transform_23, window_bounds = array<i64: 1, 16>}, {pipeline_mode = #tpu.pipeline_mode<synchronous>, transform_indices = @transform_24, window_bounds = array<i64: 16, 32>}, {pipeline_mode = #tpu.pipeline_mode<synchronous>, transform_indices = @transform_25, window_bounds = array<i64: 1, 32>}, {pipeline_mode = #tpu.pipeline_mode<synchronous>, transform_indices = @transform_26, window_bounds = array<i64: 32, 32>}, {pipeline_mode = #tpu.pipeline_mode<synchronous>, transform_indices = @transform_27, window_bounds = array<i64: 32, 32>}, {pipeline_mode = #tpu.pipeline_mode<synchronous>, transform_indices = @transform_28, window_bounds = array<i64: 1, 32>}, {pipeline_mode = #tpu.pipeline_mode<synchronous>, transform_indices = @transform_29, window_bounds = array<i64: 32, 128>}, {pipeline_mode = #tpu.pipeline_mode<synchronous>, transform_indices = @transform_30, window_bounds = array<i64: 1, 128>}, {transform_indices = @transform_31, window_bounds = array<i64: 2, 128>}]} {
    %c2_i32 = arith.constant 2 : i32
    %0 = arith.muli %arg0, %c2_i32 : i32
    %1 = tpu.iota {dimensions = array<i32: 1>} : vector<1x16x1xi32>
    %c0_i32 = arith.constant 0 : i32
    %2 = arith.addi %0, %c0_i32 : i32
    %3 = arith.index_cast %2 : i32 to index
    %4 = memref.load %arg1[%3] : memref<2xi32, #tpu.memory_space<smem>>
    %5 = vector.broadcast %4 : i32 to vector<1x16x1xi32>
    %6 = arith.cmpi slt, %1, %5 : vector<1x16x1xi32>
    %7 = arith.extui %6 : vector<1x16x1xi1> to vector<1x16x1xi32>
    %8 = arith.sitofp %7 : vector<1x16x1xi32> to vector<1x16x1xf32>
    %c1_i32 = arith.constant 1 : i32
    %9 = arith.addi %0, %c1_i32 : i32
    %10 = arith.index_cast %9 : i32 to index
    %11 = memref.load %arg1[%10] : memref<2xi32, #tpu.memory_space<smem>>
    %12 = vector.broadcast %11 : i32 to vector<1x16x1xi32>
    %13 = arith.cmpi slt, %1, %12 : vector<1x16x1xi32>
    %14 = arith.extui %13 : vector<1x16x1xi1> to vector<1x16x1xi32>
    %15 = arith.sitofp %14 : vector<1x16x1xi32> to vector<1x16x1xf32>
    %16 = tpu.concatenate %8, %15 in 0 : vector<1x16x1xf32>, vector<1x16x1xf32> -> vector<2x16x1xf32>
    %cst = arith.constant dense<0.000000e+00> : vector<2x1xf32>
    %17 = vector.multi_reduction <add>, %16, %cst [1] : vector<2x16x1xf32> to vector<2x1xf32>
    %18 = tpu.reciprocal %17 {approx = true} : vector<2x1xf32> -> vector<2x1xf32>
    %cst_0 = arith.constant 1.000000e+00 : f32
    %19 = vector.broadcast %cst_0 : f32 to vector<2x1xf32>
    %20 = arith.subf %17, %19 : vector<2x1xf32>
    %cst_1 = arith.constant 1.000000e+00 : f32
    %21 = vector.broadcast %cst_1 : f32 to vector<2x1xf32>
    %22 = arith.maximumf %20, %21 : vector<2x1xf32>
    %23 = tpu.reciprocal %22 {approx = true} : vector<2x1xf32> -> vector<2x1xf32>
    %24 = tpu.iota {dimensions = array<i32: 0>} : vector<16x1xi32>
    %c0_i32_2 = arith.constant 0 : i32
    %25 = vector.broadcast %c0_i32_2 : i32 to vector<16x1xi32>
    %26 = arith.cmpi sgt, %24, %25 : vector<16x1xi32>
    %27 = arith.extui %26 : vector<16x1xi1> to vector<16x1xi32>
    %28 = arith.sitofp %27 : vector<16x1xi32> to vector<16x1xf32>
    %c15_i32 = arith.constant 15 : i32
    %29 = vector.broadcast %c15_i32 : i32 to vector<16x1xi32>
    %30 = arith.cmpi slt, %24, %29 : vector<16x1xi32>
    %31 = arith.extui %30 : vector<16x1xi1> to vector<16x1xi32>
    %32 = arith.sitofp %31 : vector<16x1xi32> to vector<16x1xf32>
    %33 = tpu.concatenate %28, %28 in 0 : vector<16x1xf32>, vector<16x1xf32> -> vector<32x1xf32>
    %34 = tpu.concatenate %32, %32 in 0 : vector<16x1xf32>, vector<16x1xf32> -> vector<32x1xf32>
    %c0 = arith.constant 0 : index
    %c0_3 = arith.constant 0 : index
    %c0_4 = arith.constant 0 : index
    %35 = vector.load %arg2[%c0, %c0_3, %c0_4] : memref<2x16x64xf32, #tpu.memory_space<vmem>>, vector<2x16x64xf32>
    %36 = vector.shape_cast %35 : vector<2x16x64xf32> to vector<32x64xf32>
    %c0_5 = arith.constant 0 : index
    %c0_6 = arith.constant 0 : index
    %37 = vector.load %arg3[%c0_5, %c0_6] : memref<1x64xf32, #tpu.memory_space<vmem>>, vector<1x64xf32>
    %38 = vector.broadcast %37 : vector<1x64xf32> to vector<32x64xf32>
    %39 = arith.mulf %36, %38 : vector<32x64xf32>
    %c0_7 = arith.constant 0 : index
    %c0_8 = arith.constant 0 : index
    %40 = vector.load %arg4[%c0_7, %c0_8] : memref<64x128xf32, #tpu.memory_space<vmem>>, vector<64x128xf32>
    %cst_9 = arith.constant dense<0.000000e+00> : vector<32x128xf32>
    %41 = tpu.matmul %39, %40, %cst_9 {dimension_numbers = #tpu.dot_dimension_numbers<[1], [0], [0], [1], [0, 0, 1, 1], [], []>} : vector<32x64xf32>, vector<64x128xf32>, vector<32x128xf32> -> vector<32x128xf32>
    %42 = arith.mulf %41, %41 : vector<32x128xf32>
    %c0_10 = arith.constant 0 : index
    %c0_11 = arith.constant 0 : index
    %43 = vector.load %arg5[%c0_10, %c0_11] : memref<128x32xf32, #tpu.memory_space<vmem>>, vector<128x32xf32>
    %cst_12 = arith.constant dense<0.000000e+00> : vector<32x32xf32>
    %44 = tpu.matmul %42, %43, %cst_12 {dimension_numbers = #tpu.dot_dimension_numbers<[1], [0], [0], [1], [0, 0, 1, 1], [], []>} : vector<32x128xf32>, vector<128x32xf32>, vector<32x32xf32> -> vector<32x32xf32>
    %cst_13 = arith.constant 5.96046448E-8 : f32
    %45 = vector.broadcast %cst_13 : f32 to vector<32x32xf32>
    %46 = arith.addf %44, %45 : vector<32x32xf32>
    %47 = math.log %46 : vector<32x32xf32>
    %48 = vector.shape_cast %47 : vector<32x32xf32> to vector<2x16x32xf32>
    %49 = vector.broadcast %16 : vector<2x16x1xf32> to vector<2x16x32xf32>
    %50 = arith.mulf %48, %49 : vector<2x16x32xf32>
    %cst_14 = arith.constant dense<0.000000e+00> : vector<2x32xf32>
    %51 = vector.multi_reduction <add>, %50, %cst_14 [1] : vector<2x16x32xf32> to vector<2x32xf32>
    %52 = vector.shape_cast %51 : vector<2x32xf32> to vector<2x1x32xf32>
    %53 = vector.shape_cast %18 : vector<2x1xf32> to vector<2x1x1xf32>
    %54 = vector.broadcast %53 : vector<2x1x1xf32> to vector<2x1x32xf32>
    %55 = arith.mulf %52, %54 : vector<2x1x32xf32>
    %56 = vector.broadcast %55 : vector<2x1x32xf32> to vector<2x16x32xf32>
    %57 = arith.subf %48, %56 : vector<2x16x32xf32>
    %58 = vector.broadcast %16 : vector<2x16x1xf32> to vector<2x16x32xf32>
    %59 = arith.mulf %57, %58 : vector<2x16x32xf32>
    %60 = arith.mulf %59, %59 : vector<2x16x32xf32>
    %cst_15 = arith.constant dense<0.000000e+00> : vector<2x32xf32>
    %61 = vector.multi_reduction <add>, %60, %cst_15 [1] : vector<2x16x32xf32> to vector<2x32xf32>
    %62 = vector.shape_cast %61 : vector<2x32xf32> to vector<2x1x32xf32>
    %63 = vector.shape_cast %23 : vector<2x1xf32> to vector<2x1x1xf32>
    %64 = vector.broadcast %63 : vector<2x1x1xf32> to vector<2x1x32xf32>
    %65 = arith.mulf %62, %64 : vector<2x1x32xf32>
    %66 = vector.broadcast %55 : vector<2x1x32xf32> to vector<2x16x32xf32>
    %67 = arith.subf %48, %66 : vector<2x16x32xf32>
    %cst_16 = arith.constant 1.000000e-10 : f32
    %68 = vector.broadcast %cst_16 : f32 to vector<2x1x32xf32>
    %69 = arith.addf %65, %68 : vector<2x1x32xf32>
    %70 = math.rsqrt %69 : vector<2x1x32xf32>
    %71 = vector.broadcast %70 : vector<2x1x32xf32> to vector<2x16x32xf32>
    %72 = arith.mulf %67, %71 : vector<2x16x32xf32>
    %73 = vector.broadcast %16 : vector<2x16x1xf32> to vector<2x16x32xf32>
    %74 = arith.mulf %72, %73 : vector<2x16x32xf32>
    %75 = vector.shape_cast %74 : vector<2x16x32xf32> to vector<32x32xf32>
    %c0_17 = arith.constant 0 : index
    %c0_18 = arith.constant 0 : index
    %76 = vector.load %arg6[%c0_17, %c0_18] : memref<3x32xf32, #tpu.memory_space<vmem>>, vector<3x32xf32>
    %c1_i32_19 = arith.constant 1 : i32
    %77 = tpu.dynamic_rotate %75 by %c1_i32_19 dim 0 : vector<32x32xf32>, i32 -> vector<32x32xf32>
    %78 = vector.broadcast %33 : vector<32x1xf32> to vector<32x32xf32>
    %79 = arith.mulf %77, %78 : vector<32x32xf32>
    %c31_i32 = arith.constant 31 : i32
    %80 = tpu.dynamic_rotate %75 by %c31_i32 dim 0 : vector<32x32xf32>, i32 -> vector<32x32xf32>
    %81 = vector.broadcast %34 : vector<32x1xf32> to vector<32x32xf32>
    %82 = arith.mulf %80, %81 : vector<32x32xf32>
    %83 = vector.extract_strided_slice %76 {offsets = [1, 0], sizes = [1, 32], strides = [1, 1]} : vector<3x32xf32> to vector<1x32xf32>
    %84 = vector.broadcast %83 : vector<1x32xf32> to vector<32x32xf32>
    %85 = arith.mulf %75, %84 : vector<32x32xf32>
    %86 = vector.extract_strided_slice %76 {offsets = [0, 0], sizes = [1, 32], strides = [1, 1]} : vector<3x32xf32> to vector<1x32xf32>
    %87 = vector.broadcast %86 : vector<1x32xf32> to vector<32x32xf32>
    %88 = arith.mulf %79, %87 : vector<32x32xf32>
    %89 = arith.addf %85, %88 : vector<32x32xf32>
    %90 = vector.extract_strided_slice %76 {offsets = [2, 0], sizes = [1, 32], strides = [1, 1]} : vector<3x32xf32> to vector<1x32xf32>
    %91 = vector.broadcast %90 : vector<1x32xf32> to vector<32x32xf32>
    %92 = arith.mulf %82, %91 : vector<32x32xf32>
    %93 = arith.addf %89, %92 : vector<32x32xf32>
    %c0_20 = arith.constant 0 : index
    %c0_21 = arith.constant 0 : index
    %94 = vector.load %arg7[%c0_20, %c0_21] : memref<32x32xbf16, #tpu.memory_space<vmem>>, vector<32x32xbf16>
    %95 = arith.truncf %93 : vector<32x32xf32> to vector<32x32xbf16>
    %cst_22 = arith.constant dense<0.000000e+00> : vector<32x32xf32>
    %96 = tpu.matmul %95, %94, %cst_22 {dimension_numbers = #tpu.dot_dimension_numbers<[1], [0], [0], [1], [0, 0, 1, 1], [], []>} : vector<32x32xbf16>, vector<32x32xbf16>, vector<32x32xf32> -> vector<32x32xf32>
    %c0_23 = arith.constant 0 : index
    %c0_24 = arith.constant 0 : index
    %97 = vector.load %arg8[%c0_23, %c0_24] : memref<1x32xf32, #tpu.memory_space<vmem>>, vector<1x32xf32>
    %98 = vector.broadcast %97 : vector<1x32xf32> to vector<32x32xf32>
    %99 = arith.addf %96, %98 : vector<32x32xf32>
    %100 = vector.shape_cast %99 : vector<32x32xf32> to vector<2x16x32xf32>
    %101 = vector.broadcast %16 : vector<2x16x1xf32> to vector<2x16x32xf32>
    %102 = arith.mulf %100, %101 : vector<2x16x32xf32>
    %cst_25 = arith.constant dense<0.000000e+00> : vector<2x32xf32>
    %103 = vector.multi_reduction <add>, %102, %cst_25 [1] : vector<2x16x32xf32> to vector<2x32xf32>
    %104 = vector.broadcast %18 : vector<2x1xf32> to vector<2x32xf32>
    %105 = arith.mulf %103, %104 : vector<2x32xf32>
    %c0_26 = arith.constant 0 : index
    %c0_27 = arith.constant 0 : index
    %106 = vector.load %arg9[%c0_26, %c0_27] : memref<32x8xbf16, #tpu.memory_space<vmem>>, vector<32x8xbf16>
    %107 = arith.truncf %105 : vector<2x32xf32> to vector<2x32xbf16>
    %cst_28 = arith.constant dense<0.000000e+00> : vector<2x8xf32>
    %108 = tpu.matmul %107, %106, %cst_28 {dimension_numbers = #tpu.dot_dimension_numbers<[1], [0], [0], [1], [0, 0, 1, 1], [], []>} : vector<2x32xbf16>, vector<32x8xbf16>, vector<2x8xf32> -> vector<2x8xf32>
    %c0_29 = arith.constant 0 : index
    %c0_30 = arith.constant 0 : index
    %109 = vector.load %arg10[%c0_29, %c0_30] : memref<1x8xf32, #tpu.memory_space<vmem>>, vector<1x8xf32>
    %110 = vector.broadcast %109 : vector<1x8xf32> to vector<2x8xf32>
    %111 = arith.addf %108, %110 : vector<2x8xf32>
    %cst_31 = arith.constant 0.000000e+00 : f32
    %112 = vector.broadcast %cst_31 : f32 to vector<2x8xf32>
    %113 = arith.maximumf %111, %112 : vector<2x8xf32>
    %c0_32 = arith.constant 0 : index
    %c0_33 = arith.constant 0 : index
    %114 = vector.load %arg11[%c0_32, %c0_33] : memref<8x32xbf16, #tpu.memory_space<vmem>>, vector<8x32xbf16>
    %115 = arith.truncf %113 : vector<2x8xf32> to vector<2x8xbf16>
    %cst_34 = arith.constant dense<0.000000e+00> : vector<2x32xf32>
    %116 = tpu.matmul %115, %114, %cst_34 {dimension_numbers = #tpu.dot_dimension_numbers<[1], [0], [0], [1], [0, 0, 1, 1], [], []>} : vector<2x8xbf16>, vector<8x32xbf16>, vector<2x32xf32> -> vector<2x32xf32>
    %c0_35 = arith.constant 0 : index
    %c0_36 = arith.constant 0 : index
    %117 = vector.load %arg12[%c0_35, %c0_36] : memref<1x32xf32, #tpu.memory_space<vmem>>, vector<1x32xf32>
    %118 = vector.broadcast %117 : vector<1x32xf32> to vector<2x32xf32>
    %119 = arith.addf %116, %118 : vector<2x32xf32>
    %120 = arith.negf %119 : vector<2x32xf32>
    %121 = math.exp %120 : vector<2x32xf32>
    %cst_37 = arith.constant 1.000000e+00 : f32
    %122 = vector.broadcast %cst_37 : f32 to vector<2x32xf32>
    %123 = arith.addf %122, %121 : vector<2x32xf32>
    %124 = arith.divf %122, %123 : vector<2x32xf32>
    %c0_38 = arith.constant 0 : index
    %c0_39 = arith.constant 0 : index
    %125 = vector.load %arg13[%c0_38, %c0_39] : memref<32x32xbf16, #tpu.memory_space<vmem>>, vector<32x32xbf16>
    %126 = arith.truncf %75 : vector<32x32xf32> to vector<32x32xbf16>
    %cst_40 = arith.constant dense<0.000000e+00> : vector<32x32xf32>
    %127 = tpu.matmul %126, %125, %cst_40 {dimension_numbers = #tpu.dot_dimension_numbers<[1], [0], [0], [1], [0, 0, 1, 1], [], []>} : vector<32x32xbf16>, vector<32x32xbf16>, vector<32x32xf32> -> vector<32x32xf32>
    %c0_41 = arith.constant 0 : index
    %c0_42 = arith.constant 0 : index
    %128 = vector.load %arg14[%c0_41, %c0_42] : memref<1x32xf32, #tpu.memory_space<vmem>>, vector<1x32xf32>
    %129 = vector.broadcast %128 : vector<1x32xf32> to vector<32x32xf32>
    %130 = arith.addf %127, %129 : vector<32x32xf32>
    %131 = vector.shape_cast %130 : vector<32x32xf32> to vector<2x16x32xf32>
    %132 = vector.shape_cast %124 : vector<2x32xf32> to vector<2x1x32xf32>
    %133 = vector.broadcast %132 : vector<2x1x32xf32> to vector<2x16x32xf32>
    %134 = arith.mulf %100, %133 : vector<2x16x32xf32>
    %135 = arith.addf %134, %131 : vector<2x16x32xf32>
    %cst_43 = arith.constant 0.000000e+00 : f32
    %136 = vector.broadcast %cst_43 : f32 to vector<2x16x32xf32>
    %137 = arith.maximumf %135, %136 : vector<2x16x32xf32>
    %138 = vector.broadcast %16 : vector<2x16x1xf32> to vector<2x16x32xf32>
    %139 = arith.mulf %137, %138 : vector<2x16x32xf32>
    %140 = vector.shape_cast %139 : vector<2x16x32xf32> to vector<32x32xf32>
    %c0_44 = arith.constant 0 : index
    %c0_45 = arith.constant 0 : index
    %141 = vector.load %arg15[%c0_44, %c0_45] : memref<3x32xf32, #tpu.memory_space<vmem>>, vector<3x32xf32>
    %c1_i32_46 = arith.constant 1 : i32
    %142 = tpu.dynamic_rotate %140 by %c1_i32_46 dim 0 : vector<32x32xf32>, i32 -> vector<32x32xf32>
    %143 = vector.broadcast %33 : vector<32x1xf32> to vector<32x32xf32>
    %144 = arith.mulf %142, %143 : vector<32x32xf32>
    %c31_i32_47 = arith.constant 31 : i32
    %145 = tpu.dynamic_rotate %140 by %c31_i32_47 dim 0 : vector<32x32xf32>, i32 -> vector<32x32xf32>
    %146 = vector.broadcast %34 : vector<32x1xf32> to vector<32x32xf32>
    %147 = arith.mulf %145, %146 : vector<32x32xf32>
    %148 = vector.extract_strided_slice %141 {offsets = [1, 0], sizes = [1, 32], strides = [1, 1]} : vector<3x32xf32> to vector<1x32xf32>
    %149 = vector.broadcast %148 : vector<1x32xf32> to vector<32x32xf32>
    %150 = arith.mulf %140, %149 : vector<32x32xf32>
    %151 = vector.extract_strided_slice %141 {offsets = [0, 0], sizes = [1, 32], strides = [1, 1]} : vector<3x32xf32> to vector<1x32xf32>
    %152 = vector.broadcast %151 : vector<1x32xf32> to vector<32x32xf32>
    %153 = arith.mulf %144, %152 : vector<32x32xf32>
    %154 = arith.addf %150, %153 : vector<32x32xf32>
    %155 = vector.extract_strided_slice %141 {offsets = [2, 0], sizes = [1, 32], strides = [1, 1]} : vector<3x32xf32> to vector<1x32xf32>
    %156 = vector.broadcast %155 : vector<1x32xf32> to vector<32x32xf32>
    %157 = arith.mulf %147, %156 : vector<32x32xf32>
    %158 = arith.addf %154, %157 : vector<32x32xf32>
    %c0_48 = arith.constant 0 : index
    %c0_49 = arith.constant 0 : index
    %159 = vector.load %arg16[%c0_48, %c0_49] : memref<32x32xbf16, #tpu.memory_space<vmem>>, vector<32x32xbf16>
    %160 = arith.truncf %158 : vector<32x32xf32> to vector<32x32xbf16>
    %cst_50 = arith.constant dense<0.000000e+00> : vector<32x32xf32>
    %161 = tpu.matmul %160, %159, %cst_50 {dimension_numbers = #tpu.dot_dimension_numbers<[1], [0], [0], [1], [0, 0, 1, 1], [], []>} : vector<32x32xbf16>, vector<32x32xbf16>, vector<32x32xf32> -> vector<32x32xf32>
    %c0_51 = arith.constant 0 : index
    %c0_52 = arith.constant 0 : index
    %162 = vector.load %arg17[%c0_51, %c0_52] : memref<1x32xf32, #tpu.memory_space<vmem>>, vector<1x32xf32>
    %163 = vector.broadcast %162 : vector<1x32xf32> to vector<32x32xf32>
    %164 = arith.addf %161, %163 : vector<32x32xf32>
    %165 = vector.shape_cast %164 : vector<32x32xf32> to vector<2x16x32xf32>
    %166 = vector.broadcast %16 : vector<2x16x1xf32> to vector<2x16x32xf32>
    %167 = arith.mulf %165, %166 : vector<2x16x32xf32>
    %cst_53 = arith.constant dense<0.000000e+00> : vector<2x32xf32>
    %168 = vector.multi_reduction <add>, %167, %cst_53 [1] : vector<2x16x32xf32> to vector<2x32xf32>
    %169 = vector.broadcast %18 : vector<2x1xf32> to vector<2x32xf32>
    %170 = arith.mulf %168, %169 : vector<2x32xf32>
    %c0_54 = arith.constant 0 : index
    %c0_55 = arith.constant 0 : index
    %171 = vector.load %arg18[%c0_54, %c0_55] : memref<32x8xbf16, #tpu.memory_space<vmem>>, vector<32x8xbf16>
    %172 = arith.truncf %170 : vector<2x32xf32> to vector<2x32xbf16>
    %cst_56 = arith.constant dense<0.000000e+00> : vector<2x8xf32>
    %173 = tpu.matmul %172, %171, %cst_56 {dimension_numbers = #tpu.dot_dimension_numbers<[1], [0], [0], [1], [0, 0, 1, 1], [], []>} : vector<2x32xbf16>, vector<32x8xbf16>, vector<2x8xf32> -> vector<2x8xf32>
    %c0_57 = arith.constant 0 : index
    %c0_58 = arith.constant 0 : index
    %174 = vector.load %arg19[%c0_57, %c0_58] : memref<1x8xf32, #tpu.memory_space<vmem>>, vector<1x8xf32>
    %175 = vector.broadcast %174 : vector<1x8xf32> to vector<2x8xf32>
    %176 = arith.addf %173, %175 : vector<2x8xf32>
    %cst_59 = arith.constant 0.000000e+00 : f32
    %177 = vector.broadcast %cst_59 : f32 to vector<2x8xf32>
    %178 = arith.maximumf %176, %177 : vector<2x8xf32>
    %c0_60 = arith.constant 0 : index
    %c0_61 = arith.constant 0 : index
    %179 = vector.load %arg20[%c0_60, %c0_61] : memref<8x32xbf16, #tpu.memory_space<vmem>>, vector<8x32xbf16>
    %180 = arith.truncf %178 : vector<2x8xf32> to vector<2x8xbf16>
    %cst_62 = arith.constant dense<0.000000e+00> : vector<2x32xf32>
    %181 = tpu.matmul %180, %179, %cst_62 {dimension_numbers = #tpu.dot_dimension_numbers<[1], [0], [0], [1], [0, 0, 1, 1], [], []>} : vector<2x8xbf16>, vector<8x32xbf16>, vector<2x32xf32> -> vector<2x32xf32>
    %c0_63 = arith.constant 0 : index
    %c0_64 = arith.constant 0 : index
    %182 = vector.load %arg21[%c0_63, %c0_64] : memref<1x32xf32, #tpu.memory_space<vmem>>, vector<1x32xf32>
    %183 = vector.broadcast %182 : vector<1x32xf32> to vector<2x32xf32>
    %184 = arith.addf %181, %183 : vector<2x32xf32>
    %185 = arith.negf %184 : vector<2x32xf32>
    %186 = math.exp %185 : vector<2x32xf32>
    %cst_65 = arith.constant 1.000000e+00 : f32
    %187 = vector.broadcast %cst_65 : f32 to vector<2x32xf32>
    %188 = arith.addf %187, %186 : vector<2x32xf32>
    %189 = arith.divf %187, %188 : vector<2x32xf32>
    %c0_66 = arith.constant 0 : index
    %c0_67 = arith.constant 0 : index
    %190 = vector.load %arg22[%c0_66, %c0_67] : memref<32x32xbf16, #tpu.memory_space<vmem>>, vector<32x32xbf16>
    %191 = arith.truncf %140 : vector<32x32xf32> to vector<32x32xbf16>
    %cst_68 = arith.constant dense<0.000000e+00> : vector<32x32xf32>
    %192 = tpu.matmul %191, %190, %cst_68 {dimension_numbers = #tpu.dot_dimension_numbers<[1], [0], [0], [1], [0, 0, 1, 1], [], []>} : vector<32x32xbf16>, vector<32x32xbf16>, vector<32x32xf32> -> vector<32x32xf32>
    %c0_69 = arith.constant 0 : index
    %c0_70 = arith.constant 0 : index
    %193 = vector.load %arg23[%c0_69, %c0_70] : memref<1x32xf32, #tpu.memory_space<vmem>>, vector<1x32xf32>
    %194 = vector.broadcast %193 : vector<1x32xf32> to vector<32x32xf32>
    %195 = arith.addf %192, %194 : vector<32x32xf32>
    %196 = vector.shape_cast %195 : vector<32x32xf32> to vector<2x16x32xf32>
    %197 = vector.shape_cast %189 : vector<2x32xf32> to vector<2x1x32xf32>
    %198 = vector.broadcast %197 : vector<2x1x32xf32> to vector<2x16x32xf32>
    %199 = arith.mulf %165, %198 : vector<2x16x32xf32>
    %200 = arith.addf %199, %196 : vector<2x16x32xf32>
    %cst_71 = arith.constant 0.000000e+00 : f32
    %201 = vector.broadcast %cst_71 : f32 to vector<2x16x32xf32>
    %202 = arith.maximumf %200, %201 : vector<2x16x32xf32>
    %203 = vector.broadcast %16 : vector<2x16x1xf32> to vector<2x16x32xf32>
    %204 = arith.mulf %202, %203 : vector<2x16x32xf32>
    %205 = vector.shape_cast %204 : vector<2x16x32xf32> to vector<32x32xf32>
    %c0_72 = arith.constant 0 : index
    %c0_73 = arith.constant 0 : index
    %206 = vector.load %arg24[%c0_72, %c0_73] : memref<32x16xbf16, #tpu.memory_space<vmem>>, vector<32x16xbf16>
    %207 = arith.truncf %205 : vector<32x32xf32> to vector<32x32xbf16>
    %cst_74 = arith.constant dense<0.000000e+00> : vector<32x16xf32>
    %208 = tpu.matmul %207, %206, %cst_74 {dimension_numbers = #tpu.dot_dimension_numbers<[1], [0], [0], [1], [0, 0, 1, 1], [], []>} : vector<32x32xbf16>, vector<32x16xbf16>, vector<32x16xf32> -> vector<32x16xf32>
    %c0_75 = arith.constant 0 : index
    %c0_76 = arith.constant 0 : index
    %209 = vector.load %arg25[%c0_75, %c0_76] : memref<1x16xf32, #tpu.memory_space<vmem>>, vector<1x16xf32>
    %210 = vector.broadcast %209 : vector<1x16xf32> to vector<32x16xf32>
    %211 = arith.addf %208, %210 : vector<32x16xf32>
    %212 = math.tanh %211 : vector<32x16xf32>
    %c0_77 = arith.constant 0 : index
    %c0_78 = arith.constant 0 : index
    %213 = vector.load %arg26[%c0_77, %c0_78] : memref<16x32xbf16, #tpu.memory_space<vmem>>, vector<16x32xbf16>
    %214 = arith.truncf %212 : vector<32x16xf32> to vector<32x16xbf16>
    %cst_79 = arith.constant dense<0.000000e+00> : vector<32x32xf32>
    %215 = tpu.matmul %214, %213, %cst_79 {dimension_numbers = #tpu.dot_dimension_numbers<[1], [0], [0], [1], [0, 0, 1, 1], [], []>} : vector<32x16xbf16>, vector<16x32xbf16>, vector<32x32xf32> -> vector<32x32xf32>
    %c0_80 = arith.constant 0 : index
    %c0_81 = arith.constant 0 : index
    %216 = vector.load %arg27[%c0_80, %c0_81] : memref<1x32xf32, #tpu.memory_space<vmem>>, vector<1x32xf32>
    %217 = vector.broadcast %216 : vector<1x32xf32> to vector<32x32xf32>
    %218 = arith.addf %215, %217 : vector<32x32xf32>
    %219 = vector.shape_cast %218 : vector<32x32xf32> to vector<2x16x32xf32>
    %cst_82 = arith.constant 0.000000e+00 : f32
    %220 = vector.broadcast %cst_82 : f32 to vector<2x16x1xf32>
    %221 = arith.cmpf ogt, %16, %220 : vector<2x16x1xf32>
    %cst_83 = arith.constant -1.000000e+30 : f32
    %222 = vector.shape_cast %221 : vector<2x16x1xi1> to vector<2x16x1xi1>
    %223 = vector.broadcast %222 : vector<2x16x1xi1> to vector<2x16x32xi1>
    %224 = vector.broadcast %cst_83 : f32 to vector<2x16x32xf32>
    %225 = arith.select %223, %219, %224 : vector<2x16x32xi1>, vector<2x16x32xf32>
    %cst_84 = arith.constant dense<0xFF800000> : vector<2x32xf32>
    %226 = vector.multi_reduction <maximumf>, %225, %cst_84 [1] : vector<2x16x32xf32> to vector<2x32xf32>
    %227 = vector.shape_cast %226 : vector<2x32xf32> to vector<2x1x32xf32>
    %228 = vector.broadcast %227 : vector<2x1x32xf32> to vector<2x16x32xf32>
    %229 = arith.subf %225, %228 : vector<2x16x32xf32>
    %230 = math.exp %229 : vector<2x16x32xf32>
    %231 = vector.broadcast %16 : vector<2x16x1xf32> to vector<2x16x32xf32>
    %232 = arith.mulf %230, %231 : vector<2x16x32xf32>
    %cst_85 = arith.constant dense<0.000000e+00> : vector<2x32xf32>
    %233 = vector.multi_reduction <add>, %232, %cst_85 [1] : vector<2x16x32xf32> to vector<2x32xf32>
    %234 = vector.shape_cast %233 : vector<2x32xf32> to vector<2x1x32xf32>
    %235 = vector.broadcast %234 : vector<2x1x32xf32> to vector<2x16x32xf32>
    %236 = arith.divf %232, %235 : vector<2x16x32xf32>
    %237 = vector.shape_cast %205 : vector<32x32xf32> to vector<2x16x32xf32>
    %238 = arith.mulf %236, %237 : vector<2x16x32xf32>
    %cst_86 = arith.constant dense<0.000000e+00> : vector<2x32xf32>
    %239 = vector.multi_reduction <add>, %238, %cst_86 [1] : vector<2x16x32xf32> to vector<2x32xf32>
    %240 = vector.shape_cast %239 : vector<2x32xf32> to vector<2x1x32xf32>
    %241 = vector.broadcast %240 : vector<2x1x32xf32> to vector<2x16x32xf32>
    %242 = arith.subf %237, %241 : vector<2x16x32xf32>
    %243 = arith.mulf %242, %242 : vector<2x16x32xf32>
    %244 = arith.mulf %236, %243 : vector<2x16x32xf32>
    %cst_87 = arith.constant dense<0.000000e+00> : vector<2x32xf32>
    %245 = vector.multi_reduction <add>, %244, %cst_87 [1] : vector<2x16x32xf32> to vector<2x32xf32>
    %cst_88 = arith.constant 9.99999993E-9 : f32
    %246 = vector.broadcast %cst_88 : f32 to vector<2x32xf32>
    %247 = arith.maximumf %245, %246 : vector<2x32xf32>
    %248 = math.sqrt %247 : vector<2x32xf32>
    %c0_89 = arith.constant 0 : index
    %c0_90 = arith.constant 0 : index
    %249 = vector.load %arg28[%c0_89, %c0_90] : memref<32x32xbf16, #tpu.memory_space<vmem>>, vector<32x32xbf16>
    %250 = arith.truncf %239 : vector<2x32xf32> to vector<2x32xbf16>
    %cst_91 = arith.constant dense<0.000000e+00> : vector<2x32xf32>
    %251 = tpu.matmul %250, %249, %cst_91 {dimension_numbers = #tpu.dot_dimension_numbers<[1], [0], [0], [1], [0, 0, 1, 1], [], []>} : vector<2x32xbf16>, vector<32x32xbf16>, vector<2x32xf32> -> vector<2x32xf32>
    %c0_92 = arith.constant 0 : index
    %c0_93 = arith.constant 0 : index
    %252 = vector.load %arg29[%c0_92, %c0_93] : memref<32x32xbf16, #tpu.memory_space<vmem>>, vector<32x32xbf16>
    %253 = arith.truncf %248 : vector<2x32xf32> to vector<2x32xbf16>
    %cst_94 = arith.constant dense<0.000000e+00> : vector<2x32xf32>
    %254 = tpu.matmul %253, %252, %cst_94 {dimension_numbers = #tpu.dot_dimension_numbers<[1], [0], [0], [1], [0, 0, 1, 1], [], []>} : vector<2x32xbf16>, vector<32x32xbf16>, vector<2x32xf32> -> vector<2x32xf32>
    %255 = arith.addf %251, %254 : vector<2x32xf32>
    %c0_95 = arith.constant 0 : index
    %c0_96 = arith.constant 0 : index
    %256 = vector.load %arg30[%c0_95, %c0_96] : memref<1x32xf32, #tpu.memory_space<vmem>>, vector<1x32xf32>
    %257 = vector.broadcast %256 : vector<1x32xf32> to vector<2x32xf32>
    %258 = arith.addf %255, %257 : vector<2x32xf32>
    %c0_97 = arith.constant 0 : index
    %c0_98 = arith.constant 0 : index
    %259 = vector.load %arg31[%c0_97, %c0_98] : memref<32x128xf32, #tpu.memory_space<vmem>>, vector<32x128xf32>
    %cst_99 = arith.constant dense<0.000000e+00> : vector<2x128xf32>
    %260 = tpu.matmul %258, %259, %cst_99 {dimension_numbers = #tpu.dot_dimension_numbers<[1], [0], [0], [1], [0, 0, 1, 1], [], []>} : vector<2x32xf32>, vector<32x128xf32>, vector<2x128xf32> -> vector<2x128xf32>
    %c0_100 = arith.constant 0 : index
    %c0_101 = arith.constant 0 : index
    %261 = vector.load %arg32[%c0_100, %c0_101] : memref<1x128xf32, #tpu.memory_space<vmem>>, vector<1x128xf32>
    %262 = vector.broadcast %261 : vector<1x128xf32> to vector<2x128xf32>
    %263 = arith.addf %260, %262 : vector<2x128xf32>
    %c0_102 = arith.constant 0 : index
    %c0_103 = arith.constant 0 : index
    %264 = vector.load %arg33[%c0_102, %c0_103] : memref<2x128xf32, #tpu.memory_space<vmem>>, vector<2x128xf32>
    tpu.vector_store %arg33[%c0_102, %c0_103], %263 {strides = array<i32>} : memref<2x128xf32, #tpu.memory_space<vmem>>, vector<2x128xf32>,
    return
  }
  func.func @transform_0(%arg0: i32, %arg1: memref<2xi32, #tpu.memory_space<smem>>) -> (i32, i32, i32) {
    %c0_i32 = arith.constant 0 : i32
    %c0_i32_0 = arith.constant 0 : i32
    %c0_i32_1 = arith.constant 0 : i32
    return %arg0, %c0_i32, %c0_i32_0 : i32, i32, i32
  }
  func.func @transform_1(%arg0: i32, %arg1: memref<2xi32, #tpu.memory_space<smem>>) -> (i32, i32) {
    %c0_i32 = arith.constant 0 : i32
    %c0_i32_0 = arith.constant 0 : i32
    %c0_i32_1 = arith.constant 0 : i32
    return %c0_i32, %c0_i32_0 : i32, i32
  }
  func.func @transform_2(%arg0: i32, %arg1: memref<2xi32, #tpu.memory_space<smem>>) -> (i32, i32) {
    %c0_i32 = arith.constant 0 : i32
    %c0_i32_0 = arith.constant 0 : i32
    %c0_i32_1 = arith.constant 0 : i32
    return %c0_i32, %c0_i32_0 : i32, i32
  }
  func.func @transform_3(%arg0: i32, %arg1: memref<2xi32, #tpu.memory_space<smem>>) -> (i32, i32) {
    %c0_i32 = arith.constant 0 : i32
    %c0_i32_0 = arith.constant 0 : i32
    %c0_i32_1 = arith.constant 0 : i32
    return %c0_i32, %c0_i32_0 : i32, i32
  }
  func.func @transform_4(%arg0: i32, %arg1: memref<2xi32, #tpu.memory_space<smem>>) -> (i32, i32) {
    %c0_i32 = arith.constant 0 : i32
    %c0_i32_0 = arith.constant 0 : i32
    %c0_i32_1 = arith.constant 0 : i32
    return %c0_i32, %c0_i32_0 : i32, i32
  }
  func.func @transform_5(%arg0: i32, %arg1: memref<2xi32, #tpu.memory_space<smem>>) -> (i32, i32) {
    %c0_i32 = arith.constant 0 : i32
    %c0_i32_0 = arith.constant 0 : i32
    %c0_i32_1 = arith.constant 0 : i32
    return %c0_i32, %c0_i32_0 : i32, i32
  }
  func.func @transform_6(%arg0: i32, %arg1: memref<2xi32, #tpu.memory_space<smem>>) -> (i32, i32) {
    %c0_i32 = arith.constant 0 : i32
    %c0_i32_0 = arith.constant 0 : i32
    %c0_i32_1 = arith.constant 0 : i32
    return %c0_i32, %c0_i32_0 : i32, i32
  }
  func.func @transform_7(%arg0: i32, %arg1: memref<2xi32, #tpu.memory_space<smem>>) -> (i32, i32) {
    %c0_i32 = arith.constant 0 : i32
    %c0_i32_0 = arith.constant 0 : i32
    %c0_i32_1 = arith.constant 0 : i32
    return %c0_i32, %c0_i32_0 : i32, i32
  }
  func.func @transform_8(%arg0: i32, %arg1: memref<2xi32, #tpu.memory_space<smem>>) -> (i32, i32) {
    %c0_i32 = arith.constant 0 : i32
    %c0_i32_0 = arith.constant 0 : i32
    %c0_i32_1 = arith.constant 0 : i32
    return %c0_i32, %c0_i32_0 : i32, i32
  }
  func.func @transform_9(%arg0: i32, %arg1: memref<2xi32, #tpu.memory_space<smem>>) -> (i32, i32) {
    %c0_i32 = arith.constant 0 : i32
    %c0_i32_0 = arith.constant 0 : i32
    %c0_i32_1 = arith.constant 0 : i32
    return %c0_i32, %c0_i32_0 : i32, i32
  }
  func.func @transform_10(%arg0: i32, %arg1: memref<2xi32, #tpu.memory_space<smem>>) -> (i32, i32) {
    %c0_i32 = arith.constant 0 : i32
    %c0_i32_0 = arith.constant 0 : i32
    %c0_i32_1 = arith.constant 0 : i32
    return %c0_i32, %c0_i32_0 : i32, i32
  }
  func.func @transform_11(%arg0: i32, %arg1: memref<2xi32, #tpu.memory_space<smem>>) -> (i32, i32) {
    %c0_i32 = arith.constant 0 : i32
    %c0_i32_0 = arith.constant 0 : i32
    %c0_i32_1 = arith.constant 0 : i32
    return %c0_i32, %c0_i32_0 : i32, i32
  }
  func.func @transform_12(%arg0: i32, %arg1: memref<2xi32, #tpu.memory_space<smem>>) -> (i32, i32) {
    %c0_i32 = arith.constant 0 : i32
    %c0_i32_0 = arith.constant 0 : i32
    %c0_i32_1 = arith.constant 0 : i32
    return %c0_i32, %c0_i32_0 : i32, i32
  }
  func.func @transform_13(%arg0: i32, %arg1: memref<2xi32, #tpu.memory_space<smem>>) -> (i32, i32) {
    %c0_i32 = arith.constant 0 : i32
    %c0_i32_0 = arith.constant 0 : i32
    %c0_i32_1 = arith.constant 0 : i32
    return %c0_i32, %c0_i32_0 : i32, i32
  }
  func.func @transform_14(%arg0: i32, %arg1: memref<2xi32, #tpu.memory_space<smem>>) -> (i32, i32) {
    %c0_i32 = arith.constant 0 : i32
    %c0_i32_0 = arith.constant 0 : i32
    %c0_i32_1 = arith.constant 0 : i32
    return %c0_i32, %c0_i32_0 : i32, i32
  }
  func.func @transform_15(%arg0: i32, %arg1: memref<2xi32, #tpu.memory_space<smem>>) -> (i32, i32) {
    %c0_i32 = arith.constant 0 : i32
    %c0_i32_0 = arith.constant 0 : i32
    %c0_i32_1 = arith.constant 0 : i32
    return %c0_i32, %c0_i32_0 : i32, i32
  }
  func.func @transform_16(%arg0: i32, %arg1: memref<2xi32, #tpu.memory_space<smem>>) -> (i32, i32) {
    %c0_i32 = arith.constant 0 : i32
    %c0_i32_0 = arith.constant 0 : i32
    %c0_i32_1 = arith.constant 0 : i32
    return %c0_i32, %c0_i32_0 : i32, i32
  }
  func.func @transform_17(%arg0: i32, %arg1: memref<2xi32, #tpu.memory_space<smem>>) -> (i32, i32) {
    %c0_i32 = arith.constant 0 : i32
    %c0_i32_0 = arith.constant 0 : i32
    %c0_i32_1 = arith.constant 0 : i32
    return %c0_i32, %c0_i32_0 : i32, i32
  }
  func.func @transform_18(%arg0: i32, %arg1: memref<2xi32, #tpu.memory_space<smem>>) -> (i32, i32) {
    %c0_i32 = arith.constant 0 : i32
    %c0_i32_0 = arith.constant 0 : i32
    %c0_i32_1 = arith.constant 0 : i32
    return %c0_i32, %c0_i32_0 : i32, i32
  }
  func.func @transform_19(%arg0: i32, %arg1: memref<2xi32, #tpu.memory_space<smem>>) -> (i32, i32) {
    %c0_i32 = arith.constant 0 : i32
    %c0_i32_0 = arith.constant 0 : i32
    %c0_i32_1 = arith.constant 0 : i32
    return %c0_i32, %c0_i32_0 : i32, i32
  }
  func.func @transform_20(%arg0: i32, %arg1: memref<2xi32, #tpu.memory_space<smem>>) -> (i32, i32) {
    %c0_i32 = arith.constant 0 : i32
    %c0_i32_0 = arith.constant 0 : i32
    %c0_i32_1 = arith.constant 0 : i32
    return %c0_i32, %c0_i32_0 : i32, i32
  }
  func.func @transform_21(%arg0: i32, %arg1: memref<2xi32, #tpu.memory_space<smem>>) -> (i32, i32) {
    %c0_i32 = arith.constant 0 : i32
    %c0_i32_0 = arith.constant 0 : i32
    %c0_i32_1 = arith.constant 0 : i32
    return %c0_i32, %c0_i32_0 : i32, i32
  }
  func.func @transform_22(%arg0: i32, %arg1: memref<2xi32, #tpu.memory_space<smem>>) -> (i32, i32) {
    %c0_i32 = arith.constant 0 : i32
    %c0_i32_0 = arith.constant 0 : i32
    %c0_i32_1 = arith.constant 0 : i32
    return %c0_i32, %c0_i32_0 : i32, i32
  }
  func.func @transform_23(%arg0: i32, %arg1: memref<2xi32, #tpu.memory_space<smem>>) -> (i32, i32) {
    %c0_i32 = arith.constant 0 : i32
    %c0_i32_0 = arith.constant 0 : i32
    %c0_i32_1 = arith.constant 0 : i32
    return %c0_i32, %c0_i32_0 : i32, i32
  }
  func.func @transform_24(%arg0: i32, %arg1: memref<2xi32, #tpu.memory_space<smem>>) -> (i32, i32) {
    %c0_i32 = arith.constant 0 : i32
    %c0_i32_0 = arith.constant 0 : i32
    %c0_i32_1 = arith.constant 0 : i32
    return %c0_i32, %c0_i32_0 : i32, i32
  }
  func.func @transform_25(%arg0: i32, %arg1: memref<2xi32, #tpu.memory_space<smem>>) -> (i32, i32) {
    %c0_i32 = arith.constant 0 : i32
    %c0_i32_0 = arith.constant 0 : i32
    %c0_i32_1 = arith.constant 0 : i32
    return %c0_i32, %c0_i32_0 : i32, i32
  }
  func.func @transform_26(%arg0: i32, %arg1: memref<2xi32, #tpu.memory_space<smem>>) -> (i32, i32) {
    %c0_i32 = arith.constant 0 : i32
    %c0_i32_0 = arith.constant 0 : i32
    %c0_i32_1 = arith.constant 0 : i32
    return %c0_i32, %c0_i32_0 : i32, i32
  }
  func.func @transform_27(%arg0: i32, %arg1: memref<2xi32, #tpu.memory_space<smem>>) -> (i32, i32) {
    %c0_i32 = arith.constant 0 : i32
    %c0_i32_0 = arith.constant 0 : i32
    %c0_i32_1 = arith.constant 0 : i32
    return %c0_i32, %c0_i32_0 : i32, i32
  }
  func.func @transform_28(%arg0: i32, %arg1: memref<2xi32, #tpu.memory_space<smem>>) -> (i32, i32) {
    %c0_i32 = arith.constant 0 : i32
    %c0_i32_0 = arith.constant 0 : i32
    %c0_i32_1 = arith.constant 0 : i32
    return %c0_i32, %c0_i32_0 : i32, i32
  }
  func.func @transform_29(%arg0: i32, %arg1: memref<2xi32, #tpu.memory_space<smem>>) -> (i32, i32) {
    %c0_i32 = arith.constant 0 : i32
    %c0_i32_0 = arith.constant 0 : i32
    %c0_i32_1 = arith.constant 0 : i32
    return %c0_i32, %c0_i32_0 : i32, i32
  }
  func.func @transform_30(%arg0: i32, %arg1: memref<2xi32, #tpu.memory_space<smem>>) -> (i32, i32) {
    %c0_i32 = arith.constant 0 : i32
    %c0_i32_0 = arith.constant 0 : i32
    %c0_i32_1 = arith.constant 0 : i32
    return %c0_i32, %c0_i32_0 : i32, i32
  }
  func.func @transform_31(%arg0: i32, %arg1: memref<2xi32, #tpu.memory_space<smem>>) -> (i32, i32) {
    %c0_i32 = arith.constant 0 : i32
    %c0_i32_0 = arith.constant 0 : i32
    return %arg0, %c0_i32 : i32, i32
  }
}

</mosaic_0001>

<llo_original>
// kernel: model_forward.1
$region0: #{model_forward.1}
  #allocation0 [shape = 'u32[]', space=smem, size = 0x4, offset = 0x4, fixed_abs, tag = 'smem constant byte address 0x4 - core index']
  #allocation1 [shape = 'u32[72,128]{1,0:T(1,128)}', space=vmem, size = 0x9000, scoped, tag = 'internal scratch']
  #allocation2 [shape = 's32[1]{0}', space=sflag, size = 0x4, scoped, tag = 'scoped memory for model_forward.1']
  #allocation3 [shape = 'u8[512]{0}', space=smem, size = 0x200, scoped, tag = 'prefetched SMEM operand 0']
  %s0 = inlined_call_operand.smem [shape: u32[33], index: -1, kind: input, shape index: {}]
  %s1 = sld [smem:[%s0]]
  %s2 = scalar_lea.smem %s0, 1
  %s3 = sld [smem:[%s2]]
  %s4 = scalar_lea.smem %s0, 2
  %s5 = sld [smem:[%s4]]
  %s6 = scalar_lea.smem %s0, 3
  %s7 = sld [smem:[%s6]]
  %s8 = scalar_lea.smem %s0, 4
  %s9 = sld [smem:[%s8]]
  %s10 = scalar_lea.smem %s0, 5
  %s11 = sld [smem:[%s10]]
  %s12 = scalar_lea.smem %s0, 6
  %s13 = sld [smem:[%s12]]
  %s14 = scalar_lea.smem %s0, 7
  %s15 = sld [smem:[%s14]]
  %s16 = scalar_lea.smem %s0, 8
  %s17 = sld [smem:[%s16]]
  %s18 = scalar_lea.smem %s0, 9
  %s19 = sld [smem:[%s18]]
  %s20 = scalar_lea.smem %s0, 10
  %s21 = sld [smem:[%s20]]
  %s22 = scalar_lea.smem %s0, 11
  %s23 = sld [smem:[%s22]]
  %s24 = scalar_lea.smem %s0, 12
  %s25 = sld [smem:[%s24]]
  %s26 = scalar_lea.smem %s0, 13
  %s27 = sld [smem:[%s26]]
  %s28 = scalar_lea.smem %s0, 14
  %s29 = sld [smem:[%s28]]
  %s30 = scalar_lea.smem %s0, 15
  %s31 = sld [smem:[%s30]]
  %s32 = scalar_lea.smem %s0, 16
  %s33 = sld [smem:[%s32]]
  %s34 = scalar_lea.smem %s0, 17
  %s35 = sld [smem:[%s34]]
  %s36 = scalar_lea.smem %s0, 18
  %s37 = sld [smem:[%s36]]
  %s38 = scalar_lea.smem %s0, 19
  %s39 = sld [smem:[%s38]]
  %s40 = scalar_lea.smem %s0, 20
  %s41 = sld [smem:[%s40]]
  %s42 = scalar_lea.smem %s0, 21
  %s43 = sld [smem:[%s42]]
  %s44 = scalar_lea.smem %s0, 22
  %s45 = sld [smem:[%s44]]
  %s46 = scalar_lea.smem %s0, 23
  %s47 = sld [smem:[%s46]]
  %s48 = scalar_lea.smem %s0, 24
  %s49 = sld [smem:[%s48]]
  %s50 = scalar_lea.smem %s0, 25
  %s51 = sld [smem:[%s50]]
  %s52 = scalar_lea.smem %s0, 26
  %s53 = sld [smem:[%s52]]
  %s54 = scalar_lea.smem %s0, 27
  %s55 = sld [smem:[%s54]]
  %s56 = scalar_lea.smem %s0, 28
  %s57 = sld [smem:[%s56]]
  %s58 = scalar_lea.smem %s0, 29
  %s59 = sld [smem:[%s58]]
  %s60 = scalar_lea.smem %s0, 30
  %s61 = sld [smem:[%s60]]
  %s62 = scalar_lea.smem %s0, 31
  %s63 = sld [smem:[%s62]]
  %s64 = scalar_lea.smem %s0, 32
  %s65 = sld [smem:[%s64]]
  %s66 = sld [smem:[#allocation0]]
  $region134: #{model_forward.1} parent=0
    _
  %s68 = ssub.s32 1, %s66
  %s69 = scalar_select 0, %s68, %s66
  %s71 = sshll.u32 %s1, 4
  %s72 = int_to_ptr.vmem [resolvable:$true] %s71
  %74 = dma.vmem_to_smem %s72, 16, [#allocation3], [#allocation2]
  %76 = dma.done [#allocation2], 16
  %77 = sfence
  // Predicated region
  $region2: #{model_forward.1} parent=0 // pred_check
    _
  $region3: #{model_forward.1} parent=0 // pred_check_branch
    %79 = sbr.rel (0) target = $region5
  $region4: #{model_forward.1} parent=0 // pred_region
    _
  $region5: #{model_forward.1} parent=0 // pred_fallthru
    _
  // Predicated region
  $region6: #{model_forward.1} parent=0 // pred_check
    _
  $region7: #{model_forward.1} parent=0 // pred_check_branch
    %81 = sbr.rel (0) target = $region9
  $region8: #{model_forward.1} parent=0 // pred_region
    _
  $region9: #{model_forward.1} parent=0 // pred_fallthru
    _
  // Predicated region
  $region10: #{model_forward.1} parent=0 // pred_check
    _
  $region11: #{model_forward.1} parent=0 // pred_check_branch
    %83 = sbr.rel (0) target = $region13
  $region12: #{model_forward.1} parent=0 // pred_region
    _
  $region13: #{model_forward.1} parent=0 // pred_fallthru
    _
  // Predicated region
  $region14: #{model_forward.1} parent=0 // pred_check
    _
  $region15: #{model_forward.1} parent=0 // pred_check_branch
    %85 = sbr.rel (0) target = $region17
  $region16: #{model_forward.1} parent=0 // pred_region
    _
  $region17: #{model_forward.1} parent=0 // pred_fallthru
    _
  // Predicated region
  $region18: #{model_forward.1} parent=0 // pred_check
    _
  $region19: #{model_forward.1} parent=0 // pred_check_branch
    %87 = sbr.rel (0) target = $region21
  $region20: #{model_forward.1} parent=0 // pred_region
    _
  $region21: #{model_forward.1} parent=0 // pred_fallthru
    _
  // Predicated region
  $region22: #{model_forward.1} parent=0 // pred_check
    _
  $region23: #{model_forward.1} parent=0 // pred_check_branch
    %89 = sbr.rel (0) target = $region25
  $region24: #{model_forward.1} parent=0 // pred_region
    _
  $region25: #{model_forward.1} parent=0 // pred_fallthru
    _
  // Predicated region
  $region26: #{model_forward.1} parent=0 // pred_check
    _
  $region27: #{model_forward.1} parent=0 // pred_check_branch
    %91 = sbr.rel (0) target = $region29
  $region28: #{model_forward.1} parent=0 // pred_region
    _
  $region29: #{model_forward.1} parent=0 // pred_fallthru
    _
  // Predicated region
  $region30: #{model_forward.1} parent=0 // pred_check
    _
  $region31: #{model_forward.1} parent=0 // pred_check_branch
    %93 = sbr.rel (0) target = $region33
  $region32: #{model_forward.1} parent=0 // pred_region
    _
  $region33: #{model_forward.1} parent=0 // pred_fallthru
    _
  // Predicated region
  $region34: #{model_forward.1} parent=0 // pred_check
    _
  $region35: #{model_forward.1} parent=0 // pred_check_branch
    %95 = sbr.rel (0) target = $region37
  $region36: #{model_forward.1} parent=0 // pred_region
    _
  $region37: #{model_forward.1} parent=0 // pred_fallthru
    _
  // Predicated region
  $region38: #{model_forward.1} parent=0 // pred_check
    _
  $region39: #{model_forward.1} parent=0 // pred_check_branch
    %97 = sbr.rel (0) target = $region41
  $region40: #{model_forward.1} parent=0 // pred_region
    _
  $region41: #{model_forward.1} parent=0 // pred_fallthru
    _
  // Predicated region
  $region42: #{model_forward.1} parent=0 // pred_check
    _
  $region43: #{model_forward.1} parent=0 // pred_check_branch
    %99 = sbr.rel (0) target = $region45
  $region44: #{model_forward.1} parent=0 // pred_region
    _
  $region45: #{model_forward.1} parent=0 // pred_fallthru
    _
  // Predicated region
  $region46: #{model_forward.1} parent=0 // pred_check
    _
  $region47: #{model_forward.1} parent=0 // pred_check_branch
    %101 = sbr.rel (0) target = $region49
  $region48: #{model_forward.1} parent=0 // pred_region
    _
  $region49: #{model_forward.1} parent=0 // pred_fallthru
    _
  // Predicated region
  $region50: #{model_forward.1} parent=0 // pred_check
    _
  $region51: #{model_forward.1} parent=0 // pred_check_branch
    %103 = sbr.rel (0) target = $region53
  $region52: #{model_forward.1} parent=0 // pred_region
    _
  $region53: #{model_forward.1} parent=0 // pred_fallthru
    _
  // Predicated region
  $region54: #{model_forward.1} parent=0 // pred_check
    _
  $region55: #{model_forward.1} parent=0 // pred_check_branch
    %105 = sbr.rel (0) target = $region57
  $region56: #{model_forward.1} parent=0 // pred_region
    _
  $region57: #{model_forward.1} parent=0 // pred_fallthru
    _
  // Predicated region
  $region58: #{model_forward.1} parent=0 // pred_check
    _
  $region59: #{model_forward.1} parent=0 // pred_check_branch
    %107 = sbr.rel (0) target = $region61
  $region60: #{model_forward.1} parent=0 // pred_region
    _
  $region61: #{model_forward.1} parent=0 // pred_fallthru
    _
  // Predicated region
  $region62: #{model_forward.1} parent=0 // pred_check
    _
  $region63: #{model_forward.1} parent=0 // pred_check_branch
    %109 = sbr.rel (0) target = $region65
  $region64: #{model_forward.1} parent=0 // pred_region
    _
  $region65: #{model_forward.1} parent=0 // pred_fallthru
    _
  // Predicated region
  $region66: #{model_forward.1} parent=0 // pred_check
    _
  $region67: #{model_forward.1} parent=0 // pred_check_branch
    %111 = sbr.rel (0) target = $region69
  $region68: #{model_forward.1} parent=0 // pred_region
    _
  $region69: #{model_forward.1} parent=0 // pred_fallthru
    _
  // Predicated region
  $region70: #{model_forward.1} parent=0 // pred_check
    _
  $region71: #{model_forward.1} parent=0 // pred_check_branch
    %113 = sbr.rel (0) target = $region73
  $region72: #{model_forward.1} parent=0 // pred_region
    _
  $region73: #{model_forward.1} parent=0 // pred_fallthru
    _
  // Predicated region
  $region74: #{model_forward.1} parent=0 // pred_check
    _
  $region75: #{model_forward.1} parent=0 // pred_check_branch
    %115 = sbr.rel (0) target = $region77
  $region76: #{model_forward.1} parent=0 // pred_region
    _
  $region77: #{model_forward.1} parent=0 // pred_fallthru
    _
  // Predicated region
  $region78: #{model_forward.1} parent=0 // pred_check
    _
  $region79: #{model_forward.1} parent=0 // pred_check_branch
    %117 = sbr.rel (0) target = $region81
  $region80: #{model_forward.1} parent=0 // pred_region
    _
  $region81: #{model_forward.1} parent=0 // pred_fallthru
    _
  // Predicated region
  $region82: #{model_forward.1} parent=0 // pred_check
    _
  $region83: #{model_forward.1} parent=0 // pred_check_branch
    %119 = sbr.rel (0) target = $region85
  $region84: #{model_forward.1} parent=0 // pred_region
    _
  $region85: #{model_forward.1} parent=0 // pred_fallthru
    _
  // Predicated region
  $region86: #{model_forward.1} parent=0 // pred_check
    _
  $region87: #{model_forward.1} parent=0 // pred_check_branch
    %121 = sbr.rel (0) target = $region89
  $region88: #{model_forward.1} parent=0 // pred_region
    _
  $region89: #{model_forward.1} parent=0 // pred_fallthru
    _
  // Predicated region
  $region90: #{model_forward.1} parent=0 // pred_check
    _
  $region91: #{model_forward.1} parent=0 // pred_check_branch
    %123 = sbr.rel (0) target = $region93
  $region92: #{model_forward.1} parent=0 // pred_region
    _
  $region93: #{model_forward.1} parent=0 // pred_fallthru
    _
  // Predicated region
  $region94: #{model_forward.1} parent=0 // pred_check
    _
  $region95: #{model_forward.1} parent=0 // pred_check_branch
    %125 = sbr.rel (0) target = $region97
  $region96: #{model_forward.1} parent=0 // pred_region
    _
  $region97: #{model_forward.1} parent=0 // pred_fallthru
    _
  // Predicated region
  $region98: #{model_forward.1} parent=0 // pred_check
    _
  $region99: #{model_forward.1} parent=0 // pred_check_branch
    %127 = sbr.rel (0) target = $region101
  $region100: #{model_forward.1} parent=0 // pred_region
    _
  $region101: #{model_forward.1} parent=0 // pred_fallthru
    _
  // Predicated region
  $region102: #{model_forward.1} parent=0 // pred_check
    _
  $region103: #{model_forward.1} parent=0 // pred_check_branch
    %129 = sbr.rel (0) target = $region105
  $region104: #{model_forward.1} parent=0 // pred_region
    _
  $region105: #{model_forward.1} parent=0 // pred_fallthru
    _
  // Predicated region
  $region106: #{model_forward.1} parent=0 // pred_check
    _
  $region107: #{model_forward.1} parent=0 // pred_check_branch
    %131 = sbr.rel (0) target = $region109
  $region108: #{model_forward.1} parent=0 // pred_region
    _
  $region109: #{model_forward.1} parent=0 // pred_fallthru
    _
  // Predicated region
  $region110: #{model_forward.1} parent=0 // pred_check
    _
  $region111: #{model_forward.1} parent=0 // pred_check_branch
    %133 = sbr.rel (0) target = $region113
  $region112: #{model_forward.1} parent=0 // pred_region
    _
  $region113: #{model_forward.1} parent=0 // pred_fallthru
    _
  // Predicated region
  $region114: #{model_forward.1} parent=0 // pred_check
    _
  $region115: #{model_forward.1} parent=0 // pred_check_branch
    %135 = sbr.rel (0) target = $region117
  $region116: #{model_forward.1} parent=0 // pred_region
    _
  $region117: #{model_forward.1} parent=0 // pred_fallthru
    _
  // Predicated region
  $region118: #{model_forward.1} parent=0 // pred_check
    _
  $region119: #{model_forward.1} parent=0 // pred_check_branch
    %137 = sbr.rel (0) target = $region121
  $region120: #{model_forward.1} parent=0 // pred_region
    _
  $region121: #{model_forward.1} parent=0 // pred_fallthru
    _
  // Predicated region
  $region122: #{model_forward.1} parent=0 // pred_check
    _
  $region123: #{model_forward.1} parent=0 // pred_check_branch
    %139 = sbr.rel (0) target = $region125
  $region124: #{model_forward.1} parent=0 // pred_region
    _
  $region125: #{model_forward.1} parent=0 // pred_fallthru
    _
  %s141 = smul.u32 0, 2
  %v142 = vlaneseq
  %v143 = vshrl.u32 %v142, 7
  %v144 = vadd.s32 %v143, 8
  %s145 = sld [smem:[#allocation3 + %s141]]
  %v146 = vstv %s145
  %vm147 = vcmp.lt.s32.totalorder %v143, %v146
  %vm148 = vcmp.lt.s32.totalorder %v144, %v146
  %v149 = vsel %vm147, 1, 0
  %v150 = vsel %vm148, 1, 0
  %v151 = vcvt.s32.f32 %v149
  %v152 = vcvt.s32.f32 %v150
  %s153 = sadd.s32 %s141, 1
  %s154 = sld [smem:[#allocation3 + %s153]]
  %v155 = vstv %s154
  %vm156 = vcmp.lt.s32.totalorder %v143, %v155
  %vm157 = vcmp.lt.s32.totalorder %v144, %v155
  %v158 = vsel %vm156, 1, 0
  %v159 = vsel %vm157, 1, 0
  %v160 = vcvt.s32.f32 %v158
  %v161 = vcvt.s32.f32 %v159
  %vm162 = vcmask 7168
  %v163 = vsel %vm162, %v151, 0.0
  %v164 = vsel %vm162, %v152, 0.0
  %v165 = vadd.f32 %v163, %v164
  %v166 = vrot.slane %v165, 4
  %v167 = vadd.f32 %v165, %v166
  %v168 = vrot.slane %v167, 2
  %v169 = vadd.f32 %v167, %v168
  %v170 = vrot.slane %v169, 1
  %v171 = vadd.f32 %v169, %v170
  %v172 = vsel %vm162, %v160, 0.0
  %v173 = vsel %vm162, %v161, 0.0
  %v174 = vadd.f32 %v172, %v173
  %v175 = vrot.slane %v174, 4
  %v176 = vadd.f32 %v174, %v175
  %v177 = vrot.slane %v176, 2
  %v178 = vadd.f32 %v176, %v177
  %v179 = vrot.slane %v178, 1
  %v180 = vadd.f32 %v178, %v179
  %v181 = vrcp.pop %v171
  %v182 = vrcp.pop %v180
  %v183 = vsub.f32 %v171, 1.0
  %v184 = vsub.f32 %v180, 1.0
  %v185 = vmax.f32 %v183, 1.0
  %v186 = vmax.f32 %v184, 1.0
  %v187 = vrcp.pop %v185
  %v188 = vrcp.pop %v186
  %vm189 = vcmp.gt.s32.totalorder %v143, 0
  %vm190 = vcmp.gt.s32.totalorder %v144, 0
  %v191 = vsel %vm189, 1, 0
  %v192 = vsel %vm190, 1, 0
  %v193 = vcvt.s32.f32 %v191
  %v194 = vcvt.s32.f32 %v192
  %vm195 = vcmp.lt.s32.totalorder %v143, 15
  %vm196 = vcmp.lt.s32.totalorder %v144, 15
  %v197 = vsel %vm195, 1, 0
  %v198 = vsel %vm196, 1, 0
  %v199 = vcvt.s32.f32 %v197
  %v200 = vcvt.s32.f32 %v198
  %v201 = vld [vmem:[%s3] sm:$0xff]
  %v202 = vld [vmem:[%s3 + $0x8] sm:$0xff]
  %v203 = vld [vmem:[%s3 + $0x10] sm:$0xff]
  %v204 = vld [vmem:[%s3 + $0x18] sm:$0xff]
  %v205 = vld [vmem:[%s5] sm:$0x1]
  %v207 = vperm.slane %v205, 0
  %v209 = vmul.f32 %v201, %v207
  %v210 = vmul.f32 %v202, %v207
  %v211 = vmul.f32 %v203, %v207
  %v212 = vmul.f32 %v204, %v207
  %v213 = vld [vmem:[%s7] sm:$0xff]
  %v214 = vld [vmem:[%s7 + $0x8] sm:$0xff]
  %v215 = vld [vmem:[%s7 + $0x10] sm:$0xff]
  %v216 = vld [vmem:[%s7 + $0x18] sm:$0xff]
  %v217 = vld [vmem:[%s7 + $0x20] sm:$0xff]
  %v218 = vld [vmem:[%s7 + $0x28] sm:$0xff]
  %v219 = vld [vmem:[%s7 + $0x30] sm:$0xff]
  %v220 = vld [vmem:[%s7 + $0x38] sm:$0xff]
  %vm221 = vcmask 523264
  %v223 = vsel %vm221, %v209, 0
  %v226 = vsel %vm221, %v210, 0
  %v229 = vsel %vm221, %v211, 0
  %v232 = vsel %vm221, %v212, 0
  %234 = vmatpush.msra.mxu0 0.0
  %235 = vmatpush.msra.mxu0 0.0
  %236 = vmatpush.msra.mxu0 0.0
  %237 = vmatpush.msra.mxu0 0.0
  %238 = vmatpush.msra.mxu0 0.0
  %239 = vmatpush.msra.mxu0 0.0
  %240 = vmatpush.msra.mxu0 0.0
  %241 = vmatpush.msra.mxu0 0.0
  %242 = vmatpush.msra.mxu0 %v220
  %243 = vmatpush.msra.mxu0 %v219
  %244 = vmatpush.msra.mxu0 %v218
  %245 = vmatpush.msra.mxu0 %v217
  %246 = vmatpush.msra.mxu0 %v216
  %247 = vmatpush.msra.mxu0 %v215
  %248 = vmatpush.msra.mxu0 %v214
  %249 = vmatpush.msra.mxu0 %v213
  %250 = vmatmul.f32.gmra.mxu0 %v223
  %v251 = vpop.f32.mrf.mxu0
  %v252 = vadd.f32 0.0, %v251
  %253 = vmatmul.f32.gmra.mxu0 %v226
  %v254 = vpop.f32.mrf.mxu0
  %v255 = vadd.f32 0.0, %v254
  %256 = vmatmul.f32.gmra.mxu0 %v229
  %v257 = vpop.f32.mrf.mxu0
  %v258 = vadd.f32 0.0, %v257
  %259 = vmatmul.f32.gmra.mxu0 %v232
  %v260 = vpop.f32.mrf.mxu0
  %v261 = vadd.f32 0.0, %v260
  %262 = vdwg.mxu0
  %v263 = vmul.f32 %v252, %v252
  %v264 = vmul.f32 %v255, %v255
  %v265 = vmul.f32 %v258, %v258
  %v266 = vmul.f32 %v261, %v261
  %v267 = vld [vmem:[%s9] sm:$0xff]
  %v268 = vld [vmem:[%s9 + $0x8] sm:$0xff]
  %v269 = vld [vmem:[%s9 + $0x10] sm:$0xff]
  %v270 = vld [vmem:[%s9 + $0x18] sm:$0xff]
  %v271 = vld [vmem:[%s9 + $0x20] sm:$0xff]
  %v272 = vld [vmem:[%s9 + $0x28] sm:$0xff]
  %v273 = vld [vmem:[%s9 + $0x30] sm:$0xff]
  %v274 = vld [vmem:[%s9 + $0x38] sm:$0xff]
  %v275 = vld [vmem:[%s9 + $0x40] sm:$0xff]
  %v276 = vld [vmem:[%s9 + $0x48] sm:$0xff]
  %v277 = vld [vmem:[%s9 + $0x50] sm:$0xff]
  %v278 = vld [vmem:[%s9 + $0x58] sm:$0xff]
  %v279 = vld [vmem:[%s9 + $0x60] sm:$0xff]
  %v280 = vld [vmem:[%s9 + $0x68] sm:$0xff]
  %v281 = vld [vmem:[%s9 + $0x70] sm:$0xff]
  %v282 = vld [vmem:[%s9 + $0x78] sm:$0xff]
  %283 = vmatpush.msra.mxu0 %v282
  %284 = vmatpush.msra.mxu0 %v281
  %285 = vmatpush.msra.mxu0 %v280
  %286 = vmatpush.msra.mxu0 %v279
  %287 = vmatpush.msra.mxu0 %v278
  %288 = vmatpush.msra.mxu0 %v277
  %289 = vmatpush.msra.mxu0 %v276
  %290 = vmatpush.msra.mxu0 %v275
  %291 = vmatpush.msra.mxu0 %v274
  %292 = vmatpush.msra.mxu0 %v273
  %293 = vmatpush.msra.mxu0 %v272
  %294 = vmatpush.msra.mxu0 %v271
  %295 = vmatpush.msra.mxu0 %v270
  %296 = vmatpush.msra.mxu0 %v269
  %297 = vmatpush.msra.mxu0 %v268
  %298 = vmatpush.msra.mxu0 %v267
  %299 = vmatmul.f32.gmra.mxu0 %v263
  %v300 = vpop.f32.mrf.mxu0
  %v301 = vadd.f32 5.9604645e-08, %v300
  %302 = vmatmul.f32.gmra.mxu0 %v264
  %v303 = vpop.f32.mrf.mxu0
  %v304 = vadd.f32 5.9604645e-08, %v303
  %305 = vmatmul.f32.gmra.mxu0 %v265
  %v306 = vpop.f32.mrf.mxu0
  %v307 = vadd.f32 5.9604645e-08, %v306
  %308 = vmatmul.f32.gmra.mxu0 %v266
  %v309 = vpop.f32.mrf.mxu0
  %v310 = vadd.f32 5.9604645e-08, %v309
  %311 = vdwg.mxu0
  %v312 = vlog2.pop %v301
  %v313 = vmul.f32 %v312, 0.6931472
  %v314 = vlog2.pop %v304
  %v315 = vmul.f32 %v314, 0.6931472
  %v316 = vlog2.pop %v307
  %v317 = vmul.f32 %v316, 0.6931472
  %v318 = vlog2.pop %v310
  %v319 = vmul.f32 %v318, 0.6931472
  %321 = vset.pattern.permute.xlu0 0
  %322 = vperm.xlu0 %321, %v151
  %v323 = vpop.permute.xlu0 %322
  %326 = vset.pattern.permute.xlu0 0
  %327 = vperm.xlu0 %326, %v152
  %v328 = vpop.permute.xlu0 %327
  %331 = vset.pattern.permute.xlu0 0
  %332 = vperm.xlu0 %331, %v160
  %v333 = vpop.permute.xlu0 %332
  %336 = vset.pattern.permute.xlu0 0
  %337 = vperm.xlu0 %336, %v161
  %v338 = vpop.permute.xlu0 %337
  %v340 = vmul.f32 %v313, %v323
  %v341 = vmul.f32 %v315, %v328
  %v342 = vmul.f32 %v317, %v333
  %v343 = vmul.f32 %v319, %v338
  %vm344 = vcmask 261120
  %v345 = vsel %vm344, %v340, 0.0
  %v346 = vsel %vm344, %v341, 0.0
  %v347 = vadd.f32 %v345, %v346
  %v348 = vrot.slane %v347, 4
  %v349 = vadd.f32 %v347, %v348
  %v350 = vrot.slane %v349, 2
  %v351 = vadd.f32 %v349, %v350
  %v352 = vrot.slane %v351, 1
  %v353 = vadd.f32 %v351, %v352
  %v354 = vsel %vm344, %v342, 0.0
  %v355 = vsel %vm344, %v343, 0.0
  %v356 = vadd.f32 %v354, %v355
  %v357 = vrot.slane %v356, 4
  %v358 = vadd.f32 %v356, %v357
  %v359 = vrot.slane %v358, 2
  %v360 = vadd.f32 %v358, %v359
  %v361 = vrot.slane %v360, 1
  %v362 = vadd.f32 %v360, %v361
  %364 = vset.pattern.permute.xlu0 0
  %365 = vperm.xlu0 %364, %v181
  %v366 = vpop.permute.xlu0 %365
  %369 = vset.pattern.permute.xlu0 0
  %370 = vperm.xlu0 %369, %v182
  %v371 = vpop.permute.xlu0 %370
  %v373 = vmul.f32 %v353, %v366
  %v374 = vmul.f32 %v362, %v371
  %v375 = vsub.f32 %v313, %v373
  %v376 = vsub.f32 %v315, %v373
  %v377 = vsub.f32 %v317, %v374
  %v378 = vsub.f32 %v319, %v374
  %v379 = vmul.f32 %v375, %v323
  %v380 = vmul.f32 %v376, %v328
  %v381 = vmul.f32 %v377, %v333
  %v382 = vmul.f32 %v378, %v338
  %v383 = vmul.f32 %v379, %v379
  %v384 = vmul.f32 %v380, %v380
  %v385 = vmul.f32 %v381, %v381
  %v386 = vmul.f32 %v382, %v382
  %v387 = vsel %vm344, %v383, 0.0
  %v388 = vsel %vm344, %v384, 0.0
  %v389 = vadd.f32 %v387, %v388
  %v390 = vrot.slane %v389, 4
  %v391 = vadd.f32 %v389, %v390
  %v392 = vrot.slane %v391, 2
  %v393 = vadd.f32 %v391, %v392
  %v394 = vrot.slane %v393, 1
  %v395 = vadd.f32 %v393, %v394
  %v396 = vsel %vm344, %v385, 0.0
  %v397 = vsel %vm344, %v386, 0.0
  %v398 = vadd.f32 %v396, %v397
  %v399 = vrot.slane %v398, 4
  %v400 = vadd.f32 %v398, %v399
  %v401 = vrot.slane %v400, 2
  %v402 = vadd.f32 %v400, %v401
  %v403 = vrot.slane %v402, 1
  %v404 = vadd.f32 %v402, %v403
  %406 = vset.pattern.permute.xlu0 0
  %407 = vperm.xlu0 %406, %v187
  %v408 = vpop.permute.xlu0 %407
  %411 = vset.pattern.permute.xlu0 0
  %412 = vperm.xlu0 %411, %v188
  %v413 = vpop.permute.xlu0 %412
  %v415 = vmul.f32 %v395, %v408
  %v416 = vmul.f32 %v404, %v413
  %v417 = vadd.f32 %v415, 1e-10
  %v418 = vadd.f32 %v416, 1e-10
  %v419 = vrsqrt.pop %v417
  %v420 = vmul.f32 %v419, %v417
  %v421 = vmul.f32 %v420, %v419
  %v422 = vmul.f32 0.5, %v421
  %v423 = vsub.f32 1.5, %v422
  %v424 = vmul.f32 %v419, %v423
  %vm425 = vweird.f32 %v417
  %vm426 = vweird.f32 %v419
  %vm427 = vmor %vm425, %vm426
  %v428 = vsel %vm427, %v419, %v424
  %v429 = vrsqrt.pop %v418
  %v430 = vmul.f32 %v429, %v418
  %v431 = vmul.f32 %v430, %v429
  %v432 = vmul.f32 0.5, %v431
  %v433 = vsub.f32 1.5, %v432
  %v434 = vmul.f32 %v429, %v433
  %vm435 = vweird.f32 %v418
  %vm436 = vweird.f32 %v429
  %vm437 = vmor %vm435, %vm436
  %v438 = vsel %vm437, %v429, %v434
  %v439 = vmul.f32 %v375, %v428
  %v440 = vmul.f32 %v376, %v428
  %v441 = vmul.f32 %v377, %v438
  %v442 = vmul.f32 %v378, %v438
  %v443 = vmul.f32 %v439, %v323
  %v444 = vmul.f32 %v440, %v328
  %v445 = vmul.f32 %v441, %v333
  %v446 = vmul.f32 %v442, %v338
  %v447 = vld [vmem:[%s11] sm:$0x7]
  %v448 = vrot.slane %v443, 7
  %v449 = vrot.slane %v444, 7
  %v450 = vrot.slane %v445, 7
  %v451 = vrot.slane %v446, 7
  %vm452 = vcmp.lt.s32.totalorder %v143, 1
  %v453 = vsel %vm452, %v450, %v451
  %v454 = vsel %vm452, %v449, %v450
  %v455 = vsel %vm452, %v448, %v449
  %v456 = vsel %vm452, %v451, %v448
  %458 = vset.pattern.permute.xlu0 0
  %459 = vperm.xlu0 %458, %v193
  %v460 = vpop.permute.xlu0 %459
  %463 = vset.pattern.permute.xlu0 0
  %464 = vperm.xlu0 %463, %v194
  %v465 = vpop.permute.xlu0 %464
  %v467 = vmul.f32 %v456, %v460
  %v468 = vmul.f32 %v455, %v465
  %v469 = vmul.f32 %v454, %v460
  %v470 = vmul.f32 %v453, %v465
  %v471 = vrot.slane %v443, 1
  %v472 = vrot.slane %v444, 1
  %v473 = vrot.slane %v445, 1
  %v474 = vrot.slane %v446, 1
  %vm475 = vcmp.lt.s32.totalorder %v143, 7
  %v476 = vsel %vm475, %v473, %v474
  %v477 = vsel %vm475, %v472, %v473
  %v478 = vsel %vm475, %v471, %v472
  %v479 = vsel %vm475, %v474, %v471
  %481 = vset.pattern.permute.xlu0 0
  %482 = vperm.xlu0 %481, %v199
  %v483 = vpop.permute.xlu0 %482
  %486 = vset.pattern.permute.xlu0 0
  %487 = vperm.xlu0 %486, %v200
  %v488 = vpop.permute.xlu0 %487
  %v490 = vmul.f32 %v478, %v483
  %v491 = vmul.f32 %v477, %v488
  %v492 = vmul.f32 %v476, %v483
  %v493 = vmul.f32 %v479, %v488
  %v494 = vperm.slane %v447, 1
  %v495 = vmul.f32 %v443, %v494
  %v496 = vmul.f32 %v444, %v494
  %v497 = vmul.f32 %v445, %v494
  %v498 = vmul.f32 %v446, %v494
  %v499 = vperm.slane %v447, 0
  %v500 = vmul.f32 %v467, %v499
  %v501 = vmul.f32 %v468, %v499
  %v502 = vmul.f32 %v469, %v499
  %v503 = vmul.f32 %v470, %v499
  %v504 = vadd.f32 %v495, %v500
  %v505 = vadd.f32 %v496, %v501
  %v506 = vadd.f32 %v497, %v502
  %v507 = vadd.f32 %v498, %v503
  %v508 = vperm.slane %v447, 2
  %v509 = vmul.f32 %v490, %v508
  %v510 = vmul.f32 %v491, %v508
  %v511 = vmul.f32 %v492, %v508
  %v512 = vmul.f32 %v493, %v508
  %v513 = vadd.f32 %v504, %v509
  %v514 = vadd.f32 %v505, %v510
  %v515 = vadd.f32 %v506, %v511
  %v516 = vadd.f32 %v507, %v512
  %v517 = vld [vmem:[%s13] sm:$0xf]
  %v518 = vld [vmem:[%s13 + $0x4] sm:$0xf]
  %v519 = vld [vmem:[%s13 + $0x8] sm:$0xf]
  %v520 = vld [vmem:[%s13 + $0xc] sm:$0xf]
  %v521 = vpack.c.bf16 %v514, %v513
  %v522 = vpack.c.bf16 %v516, %v515
  %v523 = vld [vmem:[%s15] sm:$0x1]
  %v525 = vperm.slane %v523, 0
  %v531 = vunpack.c.l.b16 %v517
  %v532 = vunpack.c.l.b16 %v518
  %v533 = vunpack.c.l.b16 %v519
  %v534 = vunpack.c.l.b16 %v520
  %v535 = vpack.c.b16 %v532, %v531
  %v536 = vpack.c.b16 %v534, %v533
  %v540 = vsel %vm344, %v521, 0
  %v543 = vsel %vm344, %v522, 0
  %545 = vmatpush.bf16.msra.mxu0 0
  %546 = vmatpush.bf16.msra.mxu0 0
  %547 = vmatpush.bf16.msra.mxu0 0
  %548 = vmatpush.bf16.msra.mxu0 0
  %549 = vmatpush.bf16.msra.mxu0 0
  %550 = vmatpush.bf16.msra.mxu0 0
  %551 = vmatpush.bf16.msra.mxu0 %v536
  %552 = vmatpush.bf16.msra.mxu0 %v535
  %553 = vmatmul.bf16.gmra.mxu0 %v540
  %v554 = vpop.f32.mrf.mxu0
  %v555 = vadd.f32 %v525, %v554
  %v556 = vpop.f32.mrf.mxu0
  %v557 = vadd.f32 %v525, %v556
  %558 = vmatmul.bf16.gmra.mxu0 %v543
  %v559 = vpop.f32.mrf.mxu0
  %v560 = vadd.f32 %v525, %v559
  %v561 = vpop.f32.mrf.mxu0
  %v562 = vadd.f32 %v525, %v561
  %563 = vdwg.mxu0
  %v564 = vmul.f32 %v555, %v323
  %v565 = vmul.f32 %v557, %v328
  %v566 = vmul.f32 %v560, %v333
  %v567 = vmul.f32 %v562, %v338
  %v568 = vsel %vm344, %v564, 0.0
  %v569 = vsel %vm344, %v565, 0.0
  %v570 = vadd.f32 %v568, %v569
  %v571 = vrot.slane %v570, 4
  %v572 = vadd.f32 %v570, %v571
  %v573 = vrot.slane %v572, 2
  %v574 = vadd.f32 %v572, %v573
  %v575 = vrot.slane %v574, 1
  %v576 = vadd.f32 %v574, %v575
  %v577 = vsel %vm344, %v566, 0.0
  %v578 = vsel %vm344, %v567, 0.0
  %v579 = vadd.f32 %v577, %v578
  %v580 = vrot.slane %v579, 4
  %v581 = vadd.f32 %v579, %v580
  %v582 = vrot.slane %v581, 2
  %v583 = vadd.f32 %v581, %v582
  %v584 = vrot.slane %v583, 1
  %v585 = vadd.f32 %v583, %v584
  %v586 = vmul.f32 %v576, %v366
  %v587 = vmul.f32 %v585, %v371
  %v588 = vld [vmem:[%s17] sm:$0xf]
  %v589 = vld [vmem:[%s17 + $0x4] sm:$0xf]
  %v590 = vld [vmem:[%s17 + $0x8] sm:$0xf]
  %v591 = vld [vmem:[%s17 + $0xc] sm:$0xf]
  %v592 = vpack.c.bf16 %v586, %v586
  %v593 = vpack.c.bf16 %v587, %v587
  %v594 = vld [vmem:[%s19] sm:$0x1]
  %v596 = vperm.slane %v594, 0
  %v600 = vunpack.c.l.b16 %v592
  %v601 = vunpack.c.l.b16 %v593
  %vm602 = vcmask 1041409
  %v603 = vsel %vm602, %v601, %v600
  %v604 = vpack.c.b16 %v603, %v603
  %v609 = vunpack.c.l.b16 %v588
  %v610 = vunpack.c.l.b16 %v589
  %v611 = vunpack.c.l.b16 %v590
  %v612 = vunpack.c.l.b16 %v591
  %v613 = vpack.c.b16 %v610, %v609
  %v614 = vpack.c.b16 %v612, %v611
  %v618 = vsel %vm344, %v604, 0
  %620 = vmatpush.bf16.msra.mxu0 0
  %621 = vmatpush.bf16.msra.mxu0 0
  %622 = vmatpush.bf16.msra.mxu0 0
  %623 = vmatpush.bf16.msra.mxu0 0
  %624 = vmatpush.bf16.msra.mxu0 0
  %625 = vmatpush.bf16.msra.mxu0 0
  %626 = vmatpush.bf16.msra.mxu0 %v614
  %627 = vmatpush.bf16.msra.mxu0 %v613
  %628 = vmatmul.bf16.gmra.mxu0 %v618
  %v629 = vpop.f32.mrf.mxu0
  %v630 = vadd.f32 %v596, %v629
  %v631 = vpop.f32.mrf.mxu0
  %632 = vdwg.mxu0
  %v633 = vmax.f32 %v630, 0.0
  %v634 = vld [vmem:[%s21] sm:$0xf]
  %v635 = vpack.c.bf16 %v633, %v633
  %v636 = vld [vmem:[%s23] sm:$0x1]
  %v638 = vperm.slane %v636, 0
  %vm640 = vcmask 64512
  %v642 = vsel %vm640, %v635, 0
  %vm644 = vcmask 1043456
  %v646 = vsel %vm644, %v634, 0
  %648 = vmatpush.bf16.msra.mxu0 0
  %649 = vmatpush.bf16.msra.mxu0 0
  %650 = vmatpush.bf16.msra.mxu0 0
  %651 = vmatpush.bf16.msra.mxu0 0
  %652 = vmatpush.bf16.msra.mxu0 0
  %653 = vmatpush.bf16.msra.mxu0 0
  %654 = vmatpush.bf16.msra.mxu0 0
  %655 = vmatpush.bf16.msra.mxu0 %v646
  %656 = vmatmul.bf16.gmra.mxu0 %v642
  %v657 = vpop.f32.mrf.mxu0
  %v658 = vadd.f32 %v638, %v657
  %v659 = vpop.f32.mrf.mxu0
  %660 = vdwg.mxu0
  %v661 = vxor.u32 %v658, 2147483648
  %v662 = vmul.f32 %v661, 1.442695
  %v663 = vpow.pop %v662
  %v664 = vadd.f32 %v663, 1.0
  %v665 = vrcp.pop %v664
  %v666 = vmul.f32 %v664, %v665
  %v667 = vsub.f32 1.0, %v666
  %v668 = vmul.f32 %v665, %v667
  %v669 = vadd.f32 %v665, %v668
  %vm670 = vweird.f32 %v664
  %vm671 = vweird.f32 %v665
  %vm672 = vmor %vm670, %vm671
  %v673 = vsel %vm672, %v665, %v669
  %v674 = vand.u32 2147483647, %v664
  %vm675 = vcmp.eq.f32.partialorder %v674, 8.507059e+37
  %v676 = vand.u32 %v664, 2147483648
  %v677 = vor.u32 1.1754944e-38, %v676
  %v678 = vsel %vm675, %v677, %v673
  %v679 = vmul.f32 1.0, %v678
  %v680 = vld [vmem:[%s25] sm:$0xf]
  %v681 = vld [vmem:[%s25 + $0x4] sm:$0xf]
  %v682 = vld [vmem:[%s25 + $0x8] sm:$0xf]
  %v683 = vld [vmem:[%s25 + $0xc] sm:$0xf]
  %v684 = vpack.c.bf16 %v444, %v443
  %v685 = vpack.c.bf16 %v446, %v445
  %v686 = vld [vmem:[%s27] sm:$0x1]
  %v688 = vperm.slane %v686, 0
  %v694 = vunpack.c.l.b16 %v680
  %v695 = vunpack.c.l.b16 %v681
  %v696 = vunpack.c.l.b16 %v682
  %v697 = vunpack.c.l.b16 %v683
  %v698 = vpack.c.b16 %v695, %v694
  %v699 = vpack.c.b16 %v697, %v696
  %v703 = vsel %vm344, %v684, 0
  %v706 = vsel %vm344, %v685, 0
  %708 = vmatpush.bf16.msra.mxu0 0
  %709 = vmatpush.bf16.msra.mxu0 0
  %710 = vmatpush.bf16.msra.mxu0 0
  %711 = vmatpush.bf16.msra.mxu0 0
  %712 = vmatpush.bf16.msra.mxu0 0
  %713 = vmatpush.bf16.msra.mxu0 0
  %714 = vmatpush.bf16.msra.mxu0 %v699
  %715 = vmatpush.bf16.msra.mxu0 %v698
  %716 = vmatmul.bf16.gmra.mxu0 %v703
  %v717 = vpop.f32.mrf.mxu0
  %v718 = vadd.f32 %v688, %v717
  %v719 = vpop.f32.mrf.mxu0
  %v720 = vadd.f32 %v688, %v719
  %721 = vmatmul.bf16.gmra.mxu0 %v706
  %v722 = vpop.f32.mrf.mxu0
  %v723 = vadd.f32 %v688, %v722
  %v724 = vpop.f32.mrf.mxu0
  %v725 = vadd.f32 %v688, %v724
  %726 = vdwg.mxu0
  %v728 = vrot.slane %v679, 1
  %v729 = vperm.slane %v679, 0
  %v730 = vperm.slane %v728, 0
  %v733 = vmul.f32 %v555, %v729
  %v734 = vmul.f32 %v557, %v729
  %v735 = vmul.f32 %v560, %v730
  %v736 = vmul.f32 %v562, %v730
  %v737 = vadd.f32 %v733, %v718
  %v738 = vadd.f32 %v734, %v720
  %v739 = vadd.f32 %v735, %v723
  %v740 = vadd.f32 %v736, %v725
  %v741 = vmax.f32 %v737, 0.0
  %v742 = vmax.f32 %v738, 0.0
  %v743 = vmax.f32 %v739, 0.0
  %v744 = vmax.f32 %v740, 0.0
  %v745 = vmul.f32 %v741, %v323
  %v746 = vmul.f32 %v742, %v328
  %v747 = vmul.f32 %v743, %v333
  %v748 = vmul.f32 %v744, %v338
  %v749 = vld [vmem:[%s29] sm:$0x7]
  %v750 = vrot.slane %v745, 7
  %v751 = vrot.slane %v746, 7
  %v752 = vrot.slane %v747, 7
  %v753 = vrot.slane %v748, 7
  %v754 = vsel %vm452, %v752, %v753
  %v755 = vsel %vm452, %v751, %v752
  %v756 = vsel %vm452, %v750, %v751
  %v757 = vsel %vm452, %v753, %v750
  %v758 = vmul.f32 %v757, %v460
  %v759 = vmul.f32 %v756, %v465
  %v760 = vmul.f32 %v755, %v460
  %v761 = vmul.f32 %v754, %v465
  %v762 = vrot.slane %v745, 1
  %v763 = vrot.slane %v746, 1
  %v764 = vrot.slane %v747, 1
  %v765 = vrot.slane %v748, 1
  %v766 = vsel %vm475, %v764, %v765
  %v767 = vsel %vm475, %v763, %v764
  %v768 = vsel %vm475, %v762, %v763
  %v769 = vsel %vm475, %v765, %v762
  %v770 = vmul.f32 %v768, %v483
  %v771 = vmul.f32 %v767, %v488
  %v772 = vmul.f32 %v766, %v483
  %v773 = vmul.f32 %v769, %v488
  %v774 = vperm.slane %v749, 1
  %v775 = vmul.f32 %v745, %v774
  %v776 = vmul.f32 %v746, %v774
  %v777 = vmul.f32 %v747, %v774
  %v778 = vmul.f32 %v748, %v774
  %v779 = vperm.slane %v749, 0
  %v780 = vmul.f32 %v758, %v779
  %v781 = vmul.f32 %v759, %v779
  %v782 = vmul.f32 %v760, %v779
  %v783 = vmul.f32 %v761, %v779
  %v784 = vadd.f32 %v775, %v780
  %v785 = vadd.f32 %v776, %v781
  %v786 = vadd.f32 %v777, %v782
  %v787 = vadd.f32 %v778, %v783
  %v788 = vperm.slane %v749, 2
  %v789 = vmul.f32 %v770, %v788
  %v790 = vmul.f32 %v771, %v788
  %v791 = vmul.f32 %v772, %v788
  %v792 = vmul.f32 %v773, %v788
  %v793 = vadd.f32 %v784, %v789
  %v794 = vadd.f32 %v785, %v790
  %v795 = vadd.f32 %v786, %v791
  %v796 = vadd.f32 %v787, %v792
  %v797 = vld [vmem:[%s31] sm:$0xf]
  %v798 = vld [vmem:[%s31 + $0x4] sm:$0xf]
  %v799 = vld [vmem:[%s31 + $0x8] sm:$0xf]
  %v800 = vld [vmem:[%s31 + $0xc] sm:$0xf]
  %v801 = vpack.c.bf16 %v794, %v793
  %v802 = vpack.c.bf16 %v796, %v795
  %v803 = vld [vmem:[%s33] sm:$0x1]
  %v805 = vperm.slane %v803, 0
  %v811 = vunpack.c.l.b16 %v797
  %v812 = vunpack.c.l.b16 %v798
  %v813 = vunpack.c.l.b16 %v799
  %v814 = vunpack.c.l.b16 %v800
  %v815 = vpack.c.b16 %v812, %v811
  %v816 = vpack.c.b16 %v814, %v813
  %v820 = vsel %vm344, %v801, 0
  %v823 = vsel %vm344, %v802, 0
  %825 = vmatpush.bf16.msra.mxu0 0
  %826 = vmatpush.bf16.msra.mxu0 0
  %827 = vmatpush.bf16.msra.mxu0 0
  %828 = vmatpush.bf16.msra.mxu0 0
  %829 = vmatpush.bf16.msra.mxu0 0
  %830 = vmatpush.bf16.msra.mxu0 0
  %831 = vmatpush.bf16.msra.mxu0 %v816
  %832 = vmatpush.bf16.msra.mxu0 %v815
  %833 = vmatmul.bf16.gmra.mxu0 %v820
  %v834 = vpop.f32.mrf.mxu0
  %v835 = vadd.f32 %v805, %v834
  %v836 = vpop.f32.mrf.mxu0
  %v837 = vadd.f32 %v805, %v836
  %838 = vmatmul.bf16.gmra.mxu0 %v823
  %v839 = vpop.f32.mrf.mxu0
  %v840 = vadd.f32 %v805, %v839
  %v841 = vpop.f32.mrf.mxu0
  %v842 = vadd.f32 %v805, %v841
  %843 = vdwg.mxu0
  %v844 = vmul.f32 %v835, %v323
  %v845 = vmul.f32 %v837, %v328
  %v846 = vmul.f32 %v840, %v333
  %v847 = vmul.f32 %v842, %v338
  %v848 = vsel %vm344, %v844, 0.0
  %v849 = vsel %vm344, %v845, 0.0
  %v850 = vadd.f32 %v848, %v849
  %v851 = vrot.slane %v850, 4
  %v852 = vadd.f32 %v850, %v851
  %v853 = vrot.slane %v852, 2
  %v854 = vadd.f32 %v852, %v853
  %v855 = vrot.slane %v854, 1
  %v856 = vadd.f32 %v854, %v855
  %v857 = vsel %vm344, %v846, 0.0
  %v858 = vsel %vm344, %v847, 0.0
  %v859 = vadd.f32 %v857, %v858
  %v860 = vrot.slane %v859, 4
  %v861 = vadd.f32 %v859, %v860
  %v862 = vrot.slane %v861, 2
  %v863 = vadd.f32 %v861, %v862
  %v864 = vrot.slane %v863, 1
  %v865 = vadd.f32 %v863, %v864
  %v866 = vmul.f32 %v856, %v366
  %v867 = vmul.f32 %v865, %v371
  %v868 = vld [vmem:[%s35] sm:$0xf]
  %v869 = vld [vmem:[%s35 + $0x4] sm:$0xf]
  %v870 = vld [vmem:[%s35 + $0x8] sm:$0xf]
  %v871 = vld [vmem:[%s35 + $0xc] sm:$0xf]
  %v872 = vpack.c.bf16 %v866, %v866
  %v873 = vpack.c.bf16 %v867, %v867
  %v874 = vld [vmem:[%s37] sm:$0x1]
  %v876 = vperm.slane %v874, 0
  %v880 = vunpack.c.l.b16 %v872
  %v881 = vunpack.c.l.b16 %v873
  %v882 = vsel %vm602, %v881, %v880
  %v883 = vpack.c.b16 %v882, %v882
  %v888 = vunpack.c.l.b16 %v868
  %v889 = vunpack.c.l.b16 %v869
  %v890 = vunpack.c.l.b16 %v870
  %v891 = vunpack.c.l.b16 %v871
  %v892 = vpack.c.b16 %v889, %v888
  %v893 = vpack.c.b16 %v891, %v890
  %v897 = vsel %vm344, %v883, 0
  %899 = vmatpush.bf16.msra.mxu0 0
  %900 = vmatpush.bf16.msra.mxu0 0
  %901 = vmatpush.bf16.msra.mxu0 0
  %902 = vmatpush.bf16.msra.mxu0 0
  %903 = vmatpush.bf16.msra.mxu0 0
  %904 = vmatpush.bf16.msra.mxu0 0
  %905 = vmatpush.bf16.msra.mxu0 %v893
  %906 = vmatpush.bf16.msra.mxu0 %v892
  %907 = vmatmul.bf16.gmra.mxu0 %v897
  %v908 = vpop.f32.mrf.mxu0
  %v909 = vadd.f32 %v876, %v908
  %v910 = vpop.f32.mrf.mxu0
  %911 = vdwg.mxu0
  %v912 = vmax.f32 %v909, 0.0
  %v913 = vld [vmem:[%s39] sm:$0xf]
  %v914 = vpack.c.bf16 %v912, %v912
  %v915 = vld [vmem:[%s41] sm:$0x1]
  %v917 = vperm.slane %v915, 0
  %v920 = vsel %vm640, %v914, 0
  %v923 = vsel %vm644, %v913, 0
  %925 = vmatpush.bf16.msra.mxu0 0
  %926 = vmatpush.bf16.msra.mxu0 0
  %927 = vmatpush.bf16.msra.mxu0 0
  %928 = vmatpush.bf16.msra.mxu0 0
  %929 = vmatpush.bf16.msra.mxu0 0
  %930 = vmatpush.bf16.msra.mxu0 0
  %931 = vmatpush.bf16.msra.mxu0 0
  %932 = vmatpush.bf16.msra.mxu0 %v923
  %933 = vmatmul.bf16.gmra.mxu0 %v920
  %v934 = vpop.f32.mrf.mxu0
  %v935 = vadd.f32 %v917, %v934
  %v936 = vpop.f32.mrf.mxu0
  %937 = vdwg.mxu0
  %v938 = vxor.u32 %v935, 2147483648
  %v939 = vmul.f32 %v938, 1.442695
  %v940 = vpow.pop %v939
  %v941 = vadd.f32 %v940, 1.0
  %v942 = vrcp.pop %v941
  %v943 = vmul.f32 %v941, %v942
  %v944 = vsub.f32 1.0, %v943
  %v945 = vmul.f32 %v942, %v944
  %v946 = vadd.f32 %v942, %v945
  %vm947 = vweird.f32 %v941
  %vm948 = vweird.f32 %v942
  %vm949 = vmor %vm947, %vm948
  %v950 = vsel %vm949, %v942, %v946
  %v951 = vand.u32 2147483647, %v941
  %vm952 = vcmp.eq.f32.partialorder %v951, 8.507059e+37
  %v953 = vand.u32 %v941, 2147483648
  %v954 = vor.u32 1.1754944e-38, %v953
  %v955 = vsel %vm952, %v954, %v950
  %v956 = vmul.f32 1.0, %v955
  %v957 = vld [vmem:[%s43] sm:$0xf]
  %v958 = vld [vmem:[%s43 + $0x4] sm:$0xf]
  %v959 = vld [vmem:[%s43 + $0x8] sm:$0xf]
  %v960 = vld [vmem:[%s43 + $0xc] sm:$0xf]
  %v961 = vpack.c.bf16 %v746, %v745
  %v962 = vpack.c.bf16 %v748, %v747
  %v963 = vld [vmem:[%s45] sm:$0x1]
  %v965 = vperm.slane %v963, 0
  %v971 = vunpack.c.l.b16 %v957
  %v972 = vunpack.c.l.b16 %v958
  %v973 = vunpack.c.l.b16 %v959
  %v974 = vunpack.c.l.b16 %v960
  %v975 = vpack.c.b16 %v972, %v971
  %v976 = vpack.c.b16 %v974, %v973
  %v980 = vsel %vm344, %v961, 0
  %v983 = vsel %vm344, %v962, 0
  %985 = vmatpush.bf16.msra.mxu0 0
  %986 = vmatpush.bf16.msra.mxu0 0
  %987 = vmatpush.bf16.msra.mxu0 0
  %988 = vmatpush.bf16.msra.mxu0 0
  %989 = vmatpush.bf16.msra.mxu0 0
  %990 = vmatpush.bf16.msra.mxu0 0
  %991 = vmatpush.bf16.msra.mxu0 %v976
  %992 = vmatpush.bf16.msra.mxu0 %v975
  %993 = vmatmul.bf16.gmra.mxu0 %v980
  %v994 = vpop.f32.mrf.mxu0
  %v995 = vadd.f32 %v965, %v994
  %v996 = vpop.f32.mrf.mxu0
  %v997 = vadd.f32 %v965, %v996
  %998 = vmatmul.bf16.gmra.mxu0 %v983
  %v999 = vpop.f32.mrf.mxu0
  %v1000 = vadd.f32 %v965, %v999
  %v1001 = vpop.f32.mrf.mxu0
  %v1002 = vadd.f32 %v965, %v1001
  %1003 = vdwg.mxu0
  %v1005 = vrot.slane %v956, 1
  %v1006 = vperm.slane %v956, 0
  %v1007 = vperm.slane %v1005, 0
  %v1010 = vmul.f32 %v835, %v1006
  %v1011 = vmul.f32 %v837, %v1006
  %v1012 = vmul.f32 %v840, %v1007
  %v1013 = vmul.f32 %v842, %v1007
  %v1014 = vadd.f32 %v1010, %v995
  %v1015 = vadd.f32 %v1011, %v997
  %v1016 = vadd.f32 %v1012, %v1000
  %v1017 = vadd.f32 %v1013, %v1002
  %v1018 = vmax.f32 %v1014, 0.0
  %v1019 = vmax.f32 %v1015, 0.0
  %v1020 = vmax.f32 %v1016, 0.0
  %v1021 = vmax.f32 %v1017, 0.0
  %v1022 = vmul.f32 %v1018, %v323
  %v1023 = vmul.f32 %v1019, %v328
  %v1024 = vmul.f32 %v1020, %v333
  %v1025 = vmul.f32 %v1021, %v338
  %v1026 = vld [vmem:[%s47] sm:$0xf]
  %v1027 = vld [vmem:[%s47 + $0x4] sm:$0xf]
  %v1028 = vld [vmem:[%s47 + $0x8] sm:$0xf]
  %v1029 = vld [vmem:[%s47 + $0xc] sm:$0xf]
  %v1030 = vpack.c.bf16 %v1023, %v1022
  %v1031 = vpack.c.bf16 %v1025, %v1024
  %v1032 = vld [vmem:[%s49] sm:$0x1]
  %v1034 = vperm.slane %v1032, 0
  %v1040 = vunpack.c.l.b16 %v1026
  %v1041 = vunpack.c.l.b16 %v1027
  %v1042 = vunpack.c.l.b16 %v1028
  %v1043 = vunpack.c.l.b16 %v1029
  %v1044 = vpack.c.b16 %v1041, %v1040
  %v1045 = vpack.c.b16 %v1043, %v1042
  %v1049 = vsel %vm344, %v1030, 0
  %v1052 = vsel %vm344, %v1031, 0
  %1054 = vmatpush.bf16.msra.mxu0 0
  %1055 = vmatpush.bf16.msra.mxu0 0
  %1056 = vmatpush.bf16.msra.mxu0 0
  %1057 = vmatpush.bf16.msra.mxu0 0
  %1058 = vmatpush.bf16.msra.mxu0 0
  %1059 = vmatpush.bf16.msra.mxu0 0
  %1060 = vmatpush.bf16.msra.mxu0 %v1045
  %1061 = vmatpush.bf16.msra.mxu0 %v1044
  %1062 = vmatmul.bf16.gmra.mxu0 %v1049
  %v1063 = vpop.f32.mrf.mxu0
  %v1064 = vadd.f32 %v1034, %v1063
  %v1065 = vpop.f32.mrf.mxu0
  %v1066 = vadd.f32 %v1034, %v1065
  %1067 = vmatmul.bf16.gmra.mxu0 %v1052
  %v1068 = vpop.f32.mrf.mxu0
  %v1069 = vadd.f32 %v1034, %v1068
  %v1070 = vpop.f32.mrf.mxu0
  %v1071 = vadd.f32 %v1034, %v1070
  %1072 = vdwg.mxu0
  %v1073 = vtanh.pop %v1064
  %v1074 = vtanh.pop %v1066
  %v1075 = vtanh.pop %v1069
  %v1076 = vtanh.pop %v1071
  %v1077 = vld [vmem:[%s51] sm:$0xf]
  %v1078 = vld [vmem:[%s51 + $0x4] sm:$0xf]
  %v1079 = vpack.c.bf16 %v1074, %v1073
  %v1080 = vpack.c.bf16 %v1076, %v1075
  %v1081 = vld [vmem:[%s53] sm:$0x1]
  %v1083 = vperm.slane %v1081, 0
  %v1087 = vunpack.c.l.b16 %v1077
  %v1088 = vunpack.c.l.b16 %v1078
  %v1089 = vpack.c.b16 %v1088, %v1087
  %vm1091 = vcmask 130048
  %v1093 = vsel %vm1091, %v1079, 0
  %v1096 = vsel %vm1091, %v1080, 0
  %1098 = vmatpush.bf16.msra.mxu0 0
  %1099 = vmatpush.bf16.msra.mxu0 0
  %1100 = vmatpush.bf16.msra.mxu0 0
  %1101 = vmatpush.bf16.msra.mxu0 0
  %1102 = vmatpush.bf16.msra.mxu0 0
  %1103 = vmatpush.bf16.msra.mxu0 0
  %1104 = vmatpush.bf16.msra.mxu0 0
  %1105 = vmatpush.bf16.msra.mxu0 %v1089
  %1106 = vmatmul.bf16.gmra.mxu0 %v1093
  %v1107 = vpop.f32.mrf.mxu0
  %v1108 = vadd.f32 %v1083, %v1107
  %v1109 = vpop.f32.mrf.mxu0
  %v1110 = vadd.f32 %v1083, %v1109
  %1111 = vmatmul.bf16.gmra.mxu0 %v1096
  %v1112 = vpop.f32.mrf.mxu0
  %v1113 = vadd.f32 %v1083, %v1112
  %v1114 = vpop.f32.mrf.mxu0
  %v1115 = vadd.f32 %v1083, %v1114
  %1116 = vdwg.mxu0
  %vm1117 = vcmp.gt.f32.partialorder %v151, 0.0
  %vm1118 = vcmp.gt.f32.partialorder %v152, 0.0
  %vm1119 = vcmp.gt.f32.partialorder %v160, 0.0
  %vm1120 = vcmp.gt.f32.partialorder %v161, 0.0
  %v1121 = vsel %vm1117, 1, 0
  %v1122 = vsel %vm1118, 1, 0
  %v1123 = vsel %vm1119, 1, 0
  %v1124 = vsel %vm1120, 1, 0
  %1125 = vset.pattern.permute.xlu0 0
  %1126 = vperm.xlu0 %1125, %v1121
  %v1127 = vpop.permute.xlu0 %1126
  %1128 = vset.pattern.permute.xlu0 0
  %1129 = vperm.xlu0 %1128, %v1122
  %v1130 = vpop.permute.xlu0 %1129
  %1131 = vset.pattern.permute.xlu0 0
  %1132 = vperm.xlu0 %1131, %v1123
  %v1133 = vpop.permute.xlu0 %1132
  %1134 = vset.pattern.permute.xlu0 0
  %1135 = vperm.xlu0 %1134, %v1124
  %v1136 = vpop.permute.xlu0 %1135
  %vm1137 = vcmp.eq.s32.totalorder %v1127, 1
  %vm1138 = vcmp.eq.s32.totalorder %v1130, 1
  %vm1139 = vcmp.eq.s32.totalorder %v1133, 1
  %vm1140 = vcmp.eq.s32.totalorder %v1136, 1
  %v1141 = vsel %vm1137, %v1108, -1e+30
  %v1142 = vsel %vm1138, %v1110, -1e+30
  %v1143 = vsel %vm1139, %v1113, -1e+30
  %v1144 = vsel %vm1140, %v1115, -1e+30
  %v1145 = vsel %vm344, %v1141, -inf
  %v1146 = vsel %vm344, %v1142, -inf
  %v1147 = vmax.f32 %v1145, %v1146
  %v1148 = vrot.slane %v1147, 4
  %v1149 = vmax.f32 %v1147, %v1148
  %v1150 = vrot.slane %v1149, 2
  %v1151 = vmax.f32 %v1149, %v1150
  %v1152 = vrot.slane %v1151, 1
  %v1153 = vmax.f32 %v1151, %v1152
  %v1154 = vsel %vm344, %v1143, -inf
  %v1155 = vsel %vm344, %v1144, -inf
  %v1156 = vmax.f32 %v1154, %v1155
  %v1157 = vrot.slane %v1156, 4
  %v1158 = vmax.f32 %v1156, %v1157
  %v1159 = vrot.slane %v1158, 2
  %v1160 = vmax.f32 %v1158, %v1159
  %v1161 = vrot.slane %v1160, 1
  %v1162 = vmax.f32 %v1160, %v1161
  %v1163 = vsub.f32 %v1141, %v1153
  %v1164 = vsub.f32 %v1142, %v1153
  %v1165 = vsub.f32 %v1143, %v1162
  %v1166 = vsub.f32 %v1144, %v1162
  %v1167 = vmul.f32 %v1163, 1.442695
  %v1168 = vpow.pop %v1167
  %v1169 = vmul.f32 %v1164, 1.442695
  %v1170 = vpow.pop %v1169
  %v1171 = vmul.f32 %v1165, 1.442695
  %v1172 = vpow.pop %v1171
  %v1173 = vmul.f32 %v1166, 1.442695
  %v1174 = vpow.pop %v1173
  %v1175 = vmul.f32 %v1168, %v323
  %v1176 = vmul.f32 %v1170, %v328
  %v1177 = vmul.f32 %v1172, %v333
  %v1178 = vmul.f32 %v1174, %v338
  %v1179 = vsel %vm344, %v1175, 0.0
  %v1180 = vsel %vm344, %v1176, 0.0
  %v1181 = vadd.f32 %v1179, %v1180
  %v1182 = vrot.slane %v1181, 4
  %v1183 = vadd.f32 %v1181, %v1182
  %v1184 = vrot.slane %v1183, 2
  %v1185 = vadd.f32 %v1183, %v1184
  %v1186 = vrot.slane %v1185, 1
  %v1187 = vadd.f32 %v1185, %v1186
  %v1188 = vsel %vm344, %v1177, 0.0
  %v1189 = vsel %vm344, %v1178, 0.0
  %v1190 = vadd.f32 %v1188, %v1189
  %v1191 = vrot.slane %v1190, 4
  %v1192 = vadd.f32 %v1190, %v1191
  %v1193 = vrot.slane %v1192, 2
  %v1194 = vadd.f32 %v1192, %v1193
  %v1195 = vrot.slane %v1194, 1
  %v1196 = vadd.f32 %v1194, %v1195
  %v1197 = vrcp.pop %v1187
  %v1198 = vmul.f32 %v1187, %v1197
  %v1199 = vsub.f32 1.0, %v1198
  %v1200 = vmul.f32 %v1197, %v1199
  %v1201 = vadd.f32 %v1197, %v1200
  %vm1202 = vweird.f32 %v1187
  %vm1203 = vweird.f32 %v1197
  %vm1204 = vmor %vm1202, %vm1203
  %v1205 = vsel %vm1204, %v1197, %v1201
  %v1206 = vand.u32 2147483647, %v1187
  %vm1207 = vcmp.eq.f32.partialorder %v1206, 8.507059e+37
  %v1208 = vand.u32 %v1187, 2147483648
  %v1209 = vor.u32 1.1754944e-38, %v1208
  %v1210 = vsel %vm1207, %v1209, %v1205
  %v1211 = vmul.f32 %v1175, %v1210
  %v1212 = vmul.f32 %v1176, %v1210
  %v1213 = vrcp.pop %v1196
  %v1214 = vmul.f32 %v1196, %v1213
  %v1215 = vsub.f32 1.0, %v1214
  %v1216 = vmul.f32 %v1213, %v1215
  %v1217 = vadd.f32 %v1213, %v1216
  %vm1218 = vweird.f32 %v1196
  %vm1219 = vweird.f32 %v1213
  %vm1220 = vmor %vm1218, %vm1219
  %v1221 = vsel %vm1220, %v1213, %v1217
  %v1222 = vand.u32 2147483647, %v1196
  %vm1223 = vcmp.eq.f32.partialorder %v1222, 8.507059e+37
  %v1224 = vand.u32 %v1196, 2147483648
  %v1225 = vor.u32 1.1754944e-38, %v1224
  %v1226 = vsel %vm1223, %v1225, %v1221
  %v1227 = vmul.f32 %v1177, %v1226
  %v1228 = vmul.f32 %v1178, %v1226
  %v1229 = vmul.f32 %v1211, %v1022
  %v1230 = vmul.f32 %v1212, %v1023
  %v1231 = vmul.f32 %v1227, %v1024
  %v1232 = vmul.f32 %v1228, %v1025
  %v1233 = vsel %vm344, %v1229, 0.0
  %v1234 = vsel %vm344, %v1230, 0.0
  %v1235 = vadd.f32 %v1233, %v1234
  %v1236 = vrot.slane %v1235, 4
  %v1237 = vadd.f32 %v1235, %v1236
  %v1238 = vrot.slane %v1237, 2
  %v1239 = vadd.f32 %v1237, %v1238
  %v1240 = vrot.slane %v1239, 1
  %v1241 = vadd.f32 %v1239, %v1240
  %v1242 = vsel %vm344, %v1231, 0.0
  %v1243 = vsel %vm344, %v1232, 0.0
  %v1244 = vadd.f32 %v1242, %v1243
  %v1245 = vrot.slane %v1244, 4
  %v1246 = vadd.f32 %v1244, %v1245
  %v1247 = vrot.slane %v1246, 2
  %v1248 = vadd.f32 %v1246, %v1247
  %v1249 = vrot.slane %v1248, 1
  %v1250 = vadd.f32 %v1248, %v1249
  %v1251 = vsub.f32 %v1022, %v1241
  %v1252 = vsub.f32 %v1023, %v1241
  %v1253 = vsub.f32 %v1024, %v1250
  %v1254 = vsub.f32 %v1025, %v1250
  %v1255 = vmul.f32 %v1251, %v1251
  %v1256 = vmul.f32 %v1252, %v1252
  %v1257 = vmul.f32 %v1253, %v1253
  %v1258 = vmul.f32 %v1254, %v1254
  %v1259 = vmul.f32 %v1211, %v1255
  %v1260 = vmul.f32 %v1212, %v1256
  %v1261 = vmul.f32 %v1227, %v1257
  %v1262 = vmul.f32 %v1228, %v1258
  %v1263 = vsel %vm344, %v1259, 0.0
  %v1264 = vsel %vm344, %v1260, 0.0
  %v1265 = vadd.f32 %v1263, %v1264
  %v1266 = vrot.slane %v1265, 4
  %v1267 = vadd.f32 %v1265, %v1266
  %v1268 = vrot.slane %v1267, 2
  %v1269 = vadd.f32 %v1267, %v1268
  %v1270 = vrot.slane %v1269, 1
  %v1271 = vadd.f32 %v1269, %v1270
  %v1272 = vsel %vm344, %v1261, 0.0
  %v1273 = vsel %vm344, %v1262, 0.0
  %v1274 = vadd.f32 %v1272, %v1273
  %v1275 = vrot.slane %v1274, 4
  %v1276 = vadd.f32 %v1274, %v1275
  %v1277 = vrot.slane %v1276, 2
  %v1278 = vadd.f32 %v1276, %v1277
  %v1279 = vrot.slane %v1278, 1
  %v1280 = vadd.f32 %v1278, %v1279
  %v1281 = vmax.f32 %v1271, 1e-08
  %v1282 = vmax.f32 %v1280, 1e-08
  %v1283 = vrsqrt.pop %v1281
  %v1284 = vmul.f32 %v1283, %v1281
  %v1285 = vmul.f32 %v1284, %v1283
  %v1286 = vmul.f32 0.5, %v1285
  %v1287 = vsub.f32 1.5, %v1286
  %v1288 = vmul.f32 %v1283, %v1287
  %v1289 = vmul.f32 %v1281, %v1288
  %vm1290 = vcmp.eq.f32.partialorder %v1281, inf
  %v1291 = vsel %vm1290, %v1281, %v1289
  %vm1292 = vcmp.eq.f32.partialorder %v1281, 0.0
  %v1293 = vand.u32 %v1281, 2147483648
  %v1294 = vsel %vm1292, %v1293, %v1291
  %v1295 = vrsqrt.pop %v1282
  %v1296 = vmul.f32 %v1295, %v1282
  %v1297 = vmul.f32 %v1296, %v1295
  %v1298 = vmul.f32 0.5, %v1297
  %v1299 = vsub.f32 1.5, %v1298
  %v1300 = vmul.f32 %v1295, %v1299
  %v1301 = vmul.f32 %v1282, %v1300
  %vm1302 = vcmp.eq.f32.partialorder %v1282, inf
  %v1303 = vsel %vm1302, %v1282, %v1301
  %vm1304 = vcmp.eq.f32.partialorder %v1282, 0.0
  %v1305 = vand.u32 %v1282, 2147483648
  %v1306 = vsel %vm1304, %v1305, %v1303
  %v1307 = vld [vmem:[%s55] sm:$0xf]
  %v1308 = vld [vmem:[%s55 + $0x4] sm:$0xf]
  %v1309 = vld [vmem:[%s55 + $0x8] sm:$0xf]
  %v1310 = vld [vmem:[%s55 + $0xc] sm:$0xf]
  %v1311 = vpack.c.bf16 %v1241, %v1241
  %v1312 = vpack.c.bf16 %v1250, %v1250
  %v1313 = vld [vmem:[%s57] sm:$0xf]
  %v1314 = vld [vmem:[%s57 + $0x4] sm:$0xf]
  %v1315 = vld [vmem:[%s57 + $0x8] sm:$0xf]
  %v1316 = vld [vmem:[%s57 + $0xc] sm:$0xf]
  %v1317 = vpack.c.bf16 %v1294, %v1294
  %v1318 = vpack.c.bf16 %v1306, %v1306
  %v1321 = vunpack.c.l.b16 %v1317
  %v1322 = vunpack.c.l.b16 %v1318
  %v1323 = vsel %vm602, %v1322, %v1321
  %v1324 = vpack.c.b16 %v1323, %v1323
  %v1329 = vunpack.c.l.b16 %v1313
  %v1330 = vunpack.c.l.b16 %v1314
  %v1331 = vunpack.c.l.b16 %v1315
  %v1332 = vunpack.c.l.b16 %v1316
  %v1333 = vpack.c.b16 %v1330, %v1329
  %v1334 = vpack.c.b16 %v1332, %v1331
  %v1338 = vsel %vm344, %v1324, 0
  %1340 = vmatpush.bf16.msra.mxu0 0
  %1341 = vmatpush.bf16.msra.mxu0 0
  %1342 = vmatpush.bf16.msra.mxu0 0
  %1343 = vmatpush.bf16.msra.mxu0 0
  %1344 = vmatpush.bf16.msra.mxu0 0
  %1345 = vmatpush.bf16.msra.mxu0 0
  %1346 = vmatpush.bf16.msra.mxu0 %v1334
  %1347 = vmatpush.bf16.msra.mxu0 %v1333
  %1348 = vmatmul.bf16.gmra.mxu0 %v1338
  %v1349 = vpop.f32.mrf.mxu0
  %v1350 = vadd.f32 0.0, %v1349
  %v1351 = vpop.f32.mrf.mxu0
  %1352 = vdwg.mxu0
  %v1355 = vunpack.c.l.b16 %v1311
  %v1356 = vunpack.c.l.b16 %v1312
  %v1357 = vsel %vm602, %v1356, %v1355
  %v1358 = vpack.c.b16 %v1357, %v1357
  %v1363 = vunpack.c.l.b16 %v1307
  %v1364 = vunpack.c.l.b16 %v1308
  %v1365 = vunpack.c.l.b16 %v1309
  %v1366 = vunpack.c.l.b16 %v1310
  %v1367 = vpack.c.b16 %v1364, %v1363
  %v1368 = vpack.c.b16 %v1366, %v1365
  %v1372 = vsel %vm344, %v1358, 0
  %1374 = vmatpush.bf16.msra.mxu0 0
  %1375 = vmatpush.bf16.msra.mxu0 0
  %1376 = vmatpush.bf16.msra.mxu0 0
  %1377 = vmatpush.bf16.msra.mxu0 0
  %1378 = vmatpush.bf16.msra.mxu0 0
  %1379 = vmatpush.bf16.msra.mxu0 0
  %1380 = vmatpush.bf16.msra.mxu0 %v1368
  %1381 = vmatpush.bf16.msra.mxu0 %v1367
  %1382 = vmatmul.bf16.gmra.mxu0 %v1372
  %v1383 = vpop.f32.mrf.mxu0
  %v1384 = vadd.f32 %v1350, %v1383
  %v1385 = vpop.f32.mrf.mxu0
  %1386 = vdwg.mxu0
  %v1387 = vld [vmem:[%s59] sm:$0x1]
  %v1389 = vperm.slane %v1387, 0
  %v1391 = vadd.f32 %v1384, %v1389
  %v1392 = vld [vmem:[%s61] sm:$0xff]
  %v1393 = vld [vmem:[%s61 + $0x8] sm:$0xff]
  %v1394 = vld [vmem:[%s61 + $0x10] sm:$0xff]
  %v1395 = vld [vmem:[%s61 + $0x18] sm:$0xff]
  %v1396 = vld [vmem:[%s63] sm:$0x1]
  %v1398 = vperm.slane %v1396, 0
  %v1401 = vsel %vm344, %v1391, 0
  %1403 = vmatpush.msra.mxu0 0.0
  %1404 = vmatpush.msra.mxu0 0.0
  %1405 = vmatpush.msra.mxu0 0.0
  %1406 = vmatpush.msra.mxu0 0.0
  %1407 = vmatpush.msra.mxu0 0.0
  %1408 = vmatpush.msra.mxu0 0.0
  %1409 = vmatpush.msra.mxu0 0.0
  %1410 = vmatpush.msra.mxu0 0.0
  %1411 = vmatpush.msra.mxu0 0.0
  %1412 = vmatpush.msra.mxu0 0.0
  %1413 = vmatpush.msra.mxu0 0.0
  %1414 = vmatpush.msra.mxu0 0.0
  %1415 = vmatpush.msra.mxu0 %v1395
  %1416 = vmatpush.msra.mxu0 %v1394
  %1417 = vmatpush.msra.mxu0 %v1393
  %1418 = vmatpush.msra.mxu0 %v1392
  %1419 = vmatmul.f32.gmra.mxu0 %v1401
  %v1420 = vpop.f32.mrf.mxu0
  %v1421 = vadd.f32 %v1398, %v1420
  %1422 = vdwg.mxu0
  %1423 = vst [vmem:[%s65] sm:$0x3] %v1421
  // Predicated region
  $region126: #{model_forward.1} parent=0 // pred_check
    _
  $region127: #{model_forward.1} parent=0 // pred_check_branch
    %1425 = sbr.rel (0) target = $region129
  $region128: #{model_forward.1} parent=0 // pred_region
    _
  $region129: #{model_forward.1} parent=0 // pred_fallthru
    _
  // Predicated region
  $region130: #{model_forward.1} parent=0 // pred_check
    _
  $region131: #{model_forward.1} parent=0 // pred_check_branch
    %1427 = sbr.rel (0) target = $region133
  $region132: #{model_forward.1} parent=0 // pred_region
    _
  $region133: #{model_forward.1} parent=0 // pred_fallthru
    _

</llo_original>
